<compile_context>
chip_gen: v7x
topology: tpu7x:2x2x1
jax: 0.10.0
libtpu: 0.0.40
codegen_flags: <defaults>
</compile_context>

<pallas_src>
import jax
import jax.numpy as jnp
from jax.experimental import pallas as pl
from jax.experimental.pallas import tpu as pltpu

FC1_SCALE = 0.00390625 ** 0.5   # = 0.0625 (exact power of two)
READOUT_SCALE = 32.0            # exact power of two
D_IN = 32 * 32 * 3              # 3072
N_OUT = 10
N_OUT_PAD = 128                 # lane-dense padded readout width


# ----------------------------- kernel ---------------------------------------

def abc_mlp_kernel(x_ref, w1_ref, w2_ref, w3_ref, o_ref):
    # x arrives as f32 (single HBM read); cast to bf16 in-VMEM for the MXU.
    x = x_ref[...].astype(jnp.bfloat16)
    # fc1 (0.0625 scale already folded into W1): bf16 x bf16 -> f32 MXU acc.
    h1 = jnp.dot(x, w1_ref[...], preferred_element_type=jnp.float32)
    h1 = jnp.maximum(h1, 0.0)                               # f32 epilogue
    # fc2
    h2 = jnp.dot(h1.astype(jnp.bfloat16), w2_ref[...],
                 preferred_element_type=jnp.float32)
    h2 = jnp.maximum(h2, 0.0)
    # readout (*32 folded into W3; W3 zero-padded to 128 lane-dense columns)
    y = jnp.dot(h2.astype(jnp.bfloat16), w3_ref[...],
                preferred_element_type=jnp.float32)
    o_ref[...] = y.astype(o_ref.dtype)


# ----------------------------- wrapper ---------------------------------------

def _pick_batch_tile(batch):
    """Pick a batch tile giving 2-8 pipelined grid steps (prefer >=4, even count
    so each v7x TensorCore gets >=2 steps and the x DMA is hidden)."""
    candidates = (512, 256, 128, 64, 32, 16, 8)
    for min_steps, need_even in ((4, True), (2, True), (2, False)):
        for tb in candidates:
            if batch % tb != 0:
                continue
            steps = batch // tb
            if steps >= min_steps and (steps % 2 == 0 or not need_even):
                return tb
    for tb in candidates:
        if batch % tb == 0:
            return tb
    return batch  # full-batch block (block dim == array dim is always legal)


def abc_mlp_forward_padded(x_nchw, w1_t, w2_t, w3_t, *, tb=None,
                           out_dtype=jnp.float32):
    """x_nchw: (B, 3, 32, 32) f32; w*_t: packed (in, out) bf16 weights from
    pack_params(). Returns the padded (B, N_OUT_PAD) logits; columns >= N_OUT
    are exactly zero.  The 10-column slice is left to the consumer so it fuses
    under jit instead of being a separate dispatch.  Pass out_dtype=bf16 to
    halve the output writeback if downstream tolerates it."""
    B = x_nchw.shape[0]
    x_flat = x_nchw.reshape(B, -1)                  # f32 view-reshape, no cast
    d_in = x_flat.shape[1]
    width = w1_t.shape[1]
    n_pad = w3_t.shape[1]

    if tb is None:
        tb = _pick_batch_tile(B)
    assert B % tb == 0
    grid = (B // tb,)

    out_itemsize = jnp.dtype(out_dtype).itemsize
    flops = 2 * B * (d_in * width + width * width + width * n_pad)
    bytes_accessed = (
        x_flat.size * x_flat.dtype.itemsize          # f32 x, read once in-kernel
        + w1_t.size * w1_t.dtype.itemsize
        + w2_t.size * w2_t.dtype.itemsize
        + w3_t.size * w3_t.dtype.itemsize
        + B * n_pad * out_itemsize)

    return pl.pallas_call(
        abc_mlp_kernel,
        out_shape=jax.ShapeDtypeStruct((B, n_pad), out_dtype),
        grid_spec=pltpu.PrefetchScalarGridSpec(
            num_scalar_prefetch=0,
            grid=grid,
            in_specs=[
                # activation tile marches over the batch (double-buffered) ...
                pl.BlockSpec((tb, d_in), lambda i: (i, 0)),
                # ... while the weights stay resident (constant block index).
                # TODO(synk): at width >~ 1024 add pipeline_mode=pl.Buffered(1)
                # here (resident weights never need a second buffer on v7x).
                pl.BlockSpec((d_in, width), lambda i: (0, 0)),
                pl.BlockSpec((width, width), lambda i: (0, 0)),
                pl.BlockSpec((width, n_pad), lambda i: (0, 0)),
            ],
            out_specs=pl.BlockSpec((tb, n_pad), lambda i: (i, 0)),
        ),
        compiler_params=pltpu.CompilerParams(
            # batch tiles are independent -> shard across v7x's 2 TensorCores
            # (switch to pltpu.CORE_PARALLEL if a trace shows one TC idle).
            dimension_semantics=("parallel",),
            # v5e default scoped VMEM is ~16 MiB; be explicit so bigger tb /
            # f32 x tiles never silently degrade the pipeline.
            vmem_limit_bytes=48 * 1024 * 1024,
        ),
        cost_estimate=pl.CostEstimate(
            flops=int(flops),
            transcendentals=0,
            bytes_accessed=int(bytes_accessed)),
    )(x_flat, w1_t, w2_t, w3_t)


def abc_mlp_forward(x_nchw, w1_t, w2_t, w3_t, *, n_out=N_OUT, tb=None):
    """Module-exact (B, n_out) f32 output; prefer abc_mlp_forward_padded inside
    a larger jit so the slice fuses with the consumer."""
    out = abc_mlp_forward_padded(x_nchw, w1_t, w2_t, w3_t, tb=tb,
                                 out_dtype=jnp.float32)
    return out[:, :n_out]


# ----------------------------- packing / init --------------------------------

def pack_params(w1, w2, w3, *, n_out_pad=N_OUT_PAD, dtype=jnp.bfloat16):
    """Module-style (out_features, in_features) f32 weights -> kernel operands.

    Folds the forward-pass scalars into the weights (one-time, not per call),
    transposes to (in, out), zero-pads the readout to a lane-dense width and
    casts to the MXU input dtype."""
    width = w1.shape[0]
    n_out = w3.shape[0]
    w1_f = w1 * FC1_SCALE            # relu(c*x) = c*relu(x) for c > 0
    w3_f = w3 * READOUT_SCALE
    w1_t = w1_f.T.astype(dtype)
    w2_t = w2.T.astype(dtype)
    w3_t = (jnp.zeros((width, n_out_pad), jnp.float32)
            .at[:, :n_out].set(w3_f.T).astype(dtype))
    return w1_t, w2_t, w3_t


def init_module_params(key, width=128):
    """Deterministic parameters mirroring AbcMLP.__init__ (module layout)."""
    k1, k2 = jax.random.split(key)
    # fc1: use_fan_in=False -> n_infty = width, b=0.5 -> std = width**-0.5,
    # then AbcMLP.reset_parameters divides by 0.00390625**0.5.
    w1 = jax.random.normal(k1, (width, D_IN), jnp.float32) * (width ** -0.5)
    w1 = w1 / FC1_SCALE
    # fc2: use_fan_in=True -> n_infty = width (in_features), std = width**-0.5.
    w2 = jax.random.normal(k2, (width, width), jnp.float32) * (width ** -0.5)
    # readout: zero-initialized.
    w3 = jnp.zeros((N_OUT, width), jnp.float32)
    return w1, w2, w3


# ----------------------------- reference -------------------------------------

def _hp_dot(a, b):
    return jnp.dot(a, b, preferred_element_type=jnp.float32,
                   precision=jax.lax.Precision.HIGHEST)


def ref_module_f32(x_nchw, w1, w2, w3):
    """Original module math, full f32, module-layout (out, in) weights."""
    x = x_nchw.reshape(x_nchw.shape[0], -1)
    h1 = jnp.maximum(_hp_dot(x, w1.T) * FC1_SCALE, 0.0)
    h2 = jnp.maximum(_hp_dot(h1, w2.T), 0.0)
    return _hp_dot(h2, w3.T) * READOUT_SCALE


# ----------------------------- demo / checks ---------------------------------

if __name__ == "__main__":
    key = jax.random.PRNGKey(0)
    kx, kp, kr = jax.random.split(key, 3)

    B, width = 32, 128          # small demo shapes; D_IN fixed at 3072 by module
    x = jax.random.normal(kx, (B, 3, 32, 32), jnp.float32)

    # --- default module init (readout is zero => output must be exactly 0) ---
    w1, w2, w3 = init_module_params(kp, width=width)
    w1_t, w2_t, w3_t = pack_params(w1, w2, w3)
    out_pad = jax.block_until_ready(
        abc_mlp_forward_padded(x, w1_t, w2_t, w3_t))
    assert out_pad.shape == (B, N_OUT_PAD)
    assert jnp.allclose(out_pad, 0.0, atol=0.0), "zero readout must give 0"

    # --- nonzero readout to actually exercise fc3 and the *32 scale ---
    w3_nz = jax.random.normal(kr, (N_OUT, width), jnp.float32) * (width ** -0.5)
    w1_t, w2_t, w3_t = pack_params(w1, w2, w3_nz)
    out_pad = jax.block_until_ready(
        abc_mlp_forward_padded(x, w1_t, w2_t, w3_t))
    # padded lanes are exactly zero (W3 pad columns are zero)
    assert jnp.allclose(out_pad[:, N_OUT:], 0.0, atol=0.0)
    out_nz = out_pad[:, :N_OUT]

    # End-to-end check vs. the original f32 module math.  Tolerance is scaled
    # to the output magnitude: the *32 readout scale amplifies bf16 operand
    # rounding (~2^-9 relative per layer) to a few tenths absolute, so a fixed
    # tiny atol would be wrong; 3% of max|ref| gives ~10-30x headroom.
    ref_f32 = ref_module_f32(x, w1, w2, w3_nz)
    scale = float(jnp.max(jnp.abs(ref_f32))) + 1e-6
    max_err = float(jnp.max(jnp.abs(out_nz - ref_f32)))
    assert max_err <= 0.03 * scale + 1e-2, (max_err, scale)

    print("KERNEL_OK")
</pallas_src>

<mosaic_0001>
module attributes {stable_mosaic.version = 11 : i64} {
  func.func @abc_mlp_kernel(%arg0: i32, %arg1: memref<8x3072xf32, #tpu.memory_space<vmem>>, %arg2: memref<3072x128xbf16, #tpu.memory_space<vmem>>, %arg3: memref<128x128xbf16, #tpu.memory_space<vmem>>, %arg4: memref<128x128xbf16, #tpu.memory_space<vmem>>, %arg5: memref<8x128xf32, #tpu.memory_space<vmem>>) attributes {dimension_semantics = [#tpu.dimension_semantics<parallel>], iteration_bounds = array<i64: 4>, scalar_prefetch = 0 : i64, scratch_operands = 0 : i64, tpu.core_type = #tpu.core_type<tc>, window_params = [{transform_indices = @transform_0, window_bounds = array<i64: 8, 3072>}, {pipeline_mode = #tpu.pipeline_mode<synchronous>, transform_indices = @transform_1, window_bounds = array<i64: 3072, 128>}, {pipeline_mode = #tpu.pipeline_mode<synchronous>, transform_indices = @transform_2, window_bounds = array<i64: 128, 128>}, {pipeline_mode = #tpu.pipeline_mode<synchronous>, transform_indices = @transform_3, window_bounds = array<i64: 128, 128>}, {transform_indices = @transform_4, window_bounds = array<i64: 8, 128>}]} {
    %c0 = arith.constant 0 : index
    %c0_0 = arith.constant 0 : index
    %0 = vector.load %arg1[%c0, %c0_0] : memref<8x3072xf32, #tpu.memory_space<vmem>>, vector<8x3072xf32>
    %1 = arith.truncf %0 : vector<8x3072xf32> to vector<8x3072xbf16>
    %c0_1 = arith.constant 0 : index
    %c0_2 = arith.constant 0 : index
    %2 = vector.load %arg2[%c0_1, %c0_2] : memref<3072x128xbf16, #tpu.memory_space<vmem>>, vector<3072x128xbf16>
    %cst = arith.constant dense<0.000000e+00> : vector<8x128xf32>
    %3 = tpu.matmul %1, %2, %cst {dimension_numbers = #tpu.dot_dimension_numbers<[1], [0], [0], [1], [0, 0, 1, 1], [], []>} : vector<8x3072xbf16>, vector<3072x128xbf16>, vector<8x128xf32> -> vector<8x128xf32>
    %cst_3 = arith.constant 0.000000e+00 : f32
    %4 = vector.broadcast %cst_3 : f32 to vector<8x128xf32>
    %5 = arith.maximumf %3, %4 : vector<8x128xf32>
    %6 = arith.truncf %5 : vector<8x128xf32> to vector<8x128xbf16>
    %c0_4 = arith.constant 0 : index
    %c0_5 = arith.constant 0 : index
    %7 = vector.load %arg3[%c0_4, %c0_5] : memref<128x128xbf16, #tpu.memory_space<vmem>>, vector<128x128xbf16>
    %cst_6 = arith.constant dense<0.000000e+00> : vector<8x128xf32>
    %8 = tpu.matmul %6, %7, %cst_6 {dimension_numbers = #tpu.dot_dimension_numbers<[1], [0], [0], [1], [0, 0, 1, 1], [], []>} : vector<8x128xbf16>, vector<128x128xbf16>, vector<8x128xf32> -> vector<8x128xf32>
    %cst_7 = arith.constant 0.000000e+00 : f32
    %9 = vector.broadcast %cst_7 : f32 to vector<8x128xf32>
    %10 = arith.maximumf %8, %9 : vector<8x128xf32>
    %11 = arith.truncf %10 : vector<8x128xf32> to vector<8x128xbf16>
    %c0_8 = arith.constant 0 : index
    %c0_9 = arith.constant 0 : index
    %12 = vector.load %arg4[%c0_8, %c0_9] : memref<128x128xbf16, #tpu.memory_space<vmem>>, vector<128x128xbf16>
    %cst_10 = arith.constant dense<0.000000e+00> : vector<8x128xf32>
    %13 = tpu.matmul %11, %12, %cst_10 {dimension_numbers = #tpu.dot_dimension_numbers<[1], [0], [0], [1], [0, 0, 1, 1], [], []>} : vector<8x128xbf16>, vector<128x128xbf16>, vector<8x128xf32> -> vector<8x128xf32>
    %c0_11 = arith.constant 0 : index
    %c0_12 = arith.constant 0 : index
    %14 = vector.load %arg5[%c0_11, %c0_12] : memref<8x128xf32, #tpu.memory_space<vmem>>, vector<8x128xf32>
    tpu.vector_store %arg5[%c0_11, %c0_12], %13 {strides = array<i32>} : memref<8x128xf32, #tpu.memory_space<vmem>>, vector<8x128xf32>,
    return
  }
  func.func @transform_0(%arg0: i32) -> (i32, i32) {
    %c0_i32 = arith.constant 0 : i32
    %c0_i32_0 = arith.constant 0 : i32
    return %arg0, %c0_i32 : i32, i32
  }
  func.func @transform_1(%arg0: i32) -> (i32, i32) {
    %c0_i32 = arith.constant 0 : i32
    %c0_i32_0 = arith.constant 0 : i32
    %c0_i32_1 = arith.constant 0 : i32
    return %c0_i32, %c0_i32_0 : i32, i32
  }
  func.func @transform_2(%arg0: i32) -> (i32, i32) {
    %c0_i32 = arith.constant 0 : i32
    %c0_i32_0 = arith.constant 0 : i32
    %c0_i32_1 = arith.constant 0 : i32
    return %c0_i32, %c0_i32_0 : i32, i32
  }
  func.func @transform_3(%arg0: i32) -> (i32, i32) {
    %c0_i32 = arith.constant 0 : i32
    %c0_i32_0 = arith.constant 0 : i32
    %c0_i32_1 = arith.constant 0 : i32
    return %c0_i32, %c0_i32_0 : i32, i32
  }
  func.func @transform_4(%arg0: i32) -> (i32, i32) {
    %c0_i32 = arith.constant 0 : i32
    %c0_i32_0 = arith.constant 0 : i32
    return %arg0, %c0_i32 : i32, i32
  }
}

</mosaic_0001>

<llo_original>
// kernel: tpu_custom_call.1
$region0: #{tpu_custom_call.1}
  #allocation0 [shape = 'u32[]', space=smem, size = 0x4, offset = 0x4, fixed_abs, tag = 'smem constant byte address 0x4 - core index']
  #allocation1 [shape = 'u32[144,128]{1,0:T(1,128)}', space=vmem, size = 0x12000, scoped, tag = 'internal scratch']
  %s0 = inlined_call_operand.hbm [shape: f32[32,3072], index: 0, kind: input, shape index: {}]
  %s1 = inlined_call_operand.hbm [shape: bf16[3072,128], index: 1, kind: input, shape index: {}]
  %s2 = inlined_call_operand.hbm [shape: bf16[128,128], index: 2, kind: input, shape index: {}]
  %s3 = inlined_call_operand.hbm [shape: bf16[128,128], index: 3, kind: input, shape index: {}]
  %s4 = inlined_call_operand.hbm [shape: f32[32,128], index: 4, kind: output, shape index: {}]
  %s5 = sld [smem:[#allocation0]]
  $region65: #{tpu_custom_call.1} parent=0
    _
  %s7 = ssub.s32 1, %s5
  %s8 = scalar_select 0, %s7, %s5
  $region1: #{tpu_custom_call.1} parent=0
    #allocation2 [shape = 'u8[196608]{0}', space=vmem, size = 0x30000, scoped, tag = 'input window, operand 0']
    #allocation3 [shape = 's32[2]{0}', space=sflag, size = 0x8, scoped, tag = 'scoped memory for tpu_custom_call.1']
    #allocation4 [shape = 's32[2]{0}', space=sflag, size = 0x8, scoped, tag = 'scoped memory for tpu_custom_call.1']
    #allocation5 [shape = 'u8[786432]{0}', space=vmem, size = 0xc0000, scoped, tag = 'input window, operand 1, single buffered']
    #allocation6 [shape = 's32[1]{0}', space=sflag, size = 0x4, scoped, tag = 'scoped memory for tpu_custom_call.1']
    #allocation7 [shape = 'u8[32768]{0}', space=vmem, size = 0x8000, scoped, tag = 'input window, operand 2, single buffered']
    #allocation8 [shape = 'u8[32768]{0}', space=vmem, size = 0x8000, scoped, tag = 'input window, operand 3, single buffered']
    #allocation9 [shape = 's32[1]{0}', space=sflag, size = 0x4, scoped, tag = 'scoped memory for tpu_custom_call.1']
    #allocation10 [shape = 'u8[8192]{0}', space=vmem, size = 0x2000, scoped, tag = 'output window, operand 0']
    %9 = vsyncpa [#allocation3], 0
    %s10 = scalar_lea.sflag [#allocation3], 1
    %11 = vsyncpa %s10, 0
    %12 = vsyncpa [#allocation6], 0
    %13 = vsyncpa [#allocation9], 0
    %14 = vsyncpa [#allocation4], 0
    %s15 = scalar_lea.sflag [#allocation4], 1
    %16 = vsyncpa %s15, 0
    loop: start=0, step=1, limit=6
    $region2: #{tpu_custom_call.1} parent=1 // loop_pre_header
      _
    $region3: #{tpu_custom_call.1} parent=1 // loop_header
      %s18 = sphi 0, %s22
      %p19 = scmp.ge.s32.totalorder %s18, 6
      %s28 = sphi 0, %s30
      %s31 = sphi 0, %s28
      %s32 = sphi 0, %s31
      %s48 = sphi 0, %s32
      %s52 = sphi 0, %s52
      %s54 = sphi 0, %s52
      %s55 = sphi 0, %s54
      %s69 = sphi 0, %s55
      %s73 = sphi 0, %s73
      %s75 = sphi 0, %s73
      %s76 = sphi 0, %s75
      %s90 = sphi 0, %s76
      %s94 = sphi 0, %s94
      %s96 = sphi 0, %s94
      %s97 = sphi 0, %s96
      %s111 = sphi 0, %s97
      %s117 = sphi 0, %s119
      %s120 = sphi 0, %s117
      %s121 = sphi 0, %s120
      %s137 = sphi 0, %s121
    $region4: #{tpu_custom_call.1} parent=1 // loop_header_branch
      %21 = sbr.rel (%p19) target = $region8
    $region5: #{tpu_custom_call.1} parent=1 // loop_body
      %s23 = ssub.s32 %s18, 1
      %s24 = ssub.s32 %s18, 2
      %s25 = sadd.s32 %s18, 1
      %s26 = ssub.s32 %s18, %s25
      %p27 = scmp.eq.s32.totalorder %s26, 0
      %s29 = sadd.s32 %s28, 1
      %s30 = scalar_select %p27, %s28, %s29
      %p33 = pneg %p27
      %p34 = scmp.eq.s32.totalorder %s18, 3
      %p35 = por %p33, %p34
      %p36 = scmp.ne.s32.totalorder %s28, %s31
      %p37 = scmp.eq.s32.totalorder %s18, 0
      %p38 = por %p36, %p37
      %p39 = scmp.ne.s32.totalorder %s28, %s31
      %p40 = scmp.eq.s32.totalorder %s23, 3
      %p41 = por %p39, %p40
      %p42 = scmp.ne.s32.totalorder %s31, %s32
      %p43 = scmp.eq.s32.totalorder %s23, 0
      %p44 = por %p42, %p43
      %p45 = scmp.ne.s32.totalorder %s31, %s32
      %p46 = scmp.eq.s32.totalorder %s24, 3
      %p47 = por %p45, %p46
      %p49 = scmp.ne.s32.totalorder %s32, %s48
      %p50 = scmp.eq.s32.totalorder %s24, 0
      %p51 = por %p49, %p50
      %s53 = sadd.s32 %s52, 1
      %p56 = scmp.eq.s32.totalorder %s18, 3
      %p57 = scmp.ne.s32.totalorder %s52, %s54
      %p58 = scmp.eq.s32.totalorder %s18, 0
      %p59 = por %p57, %p58
      %p60 = scmp.ne.s32.totalorder %s52, %s54
      %p61 = scmp.eq.s32.totalorder %s23, 3
      %p62 = por %p60, %p61
      %p63 = scmp.ne.s32.totalorder %s54, %s55
      %p64 = scmp.eq.s32.totalorder %s23, 0
      %p65 = por %p63, %p64
      %p66 = scmp.ne.s32.totalorder %s54, %s55
      %p67 = scmp.eq.s32.totalorder %s24, 3
      %p68 = por %p66, %p67
      %p70 = scmp.ne.s32.totalorder %s55, %s69
      %p71 = scmp.eq.s32.totalorder %s24, 0
      %p72 = por %p70, %p71
      %s74 = sadd.s32 %s73, 1
      %p77 = scmp.eq.s32.totalorder %s18, 3
      %p78 = scmp.ne.s32.totalorder %s73, %s75
      %p79 = scmp.eq.s32.totalorder %s18, 0
      %p80 = por %p78, %p79
      %p81 = scmp.ne.s32.totalorder %s73, %s75
      %p82 = scmp.eq.s32.totalorder %s23, 3
      %p83 = por %p81, %p82
      %p84 = scmp.ne.s32.totalorder %s75, %s76
      %p85 = scmp.eq.s32.totalorder %s23, 0
      %p86 = por %p84, %p85
      %p87 = scmp.ne.s32.totalorder %s75, %s76
      %p88 = scmp.eq.s32.totalorder %s24, 3
      %p89 = por %p87, %p88
      %p91 = scmp.ne.s32.totalorder %s76, %s90
      %p92 = scmp.eq.s32.totalorder %s24, 0
      %p93 = por %p91, %p92
      %s95 = sadd.s32 %s94, 1
      %p98 = scmp.eq.s32.totalorder %s18, 3
      %p99 = scmp.ne.s32.totalorder %s94, %s96
      %p100 = scmp.eq.s32.totalorder %s18, 0
      %p101 = por %p99, %p100
      %p102 = scmp.ne.s32.totalorder %s94, %s96
      %p103 = scmp.eq.s32.totalorder %s23, 3
      %p104 = por %p102, %p103
      %p105 = scmp.ne.s32.totalorder %s96, %s97
      %p106 = scmp.eq.s32.totalorder %s23, 0
      %p107 = por %p105, %p106
      %p108 = scmp.ne.s32.totalorder %s96, %s97
      %p109 = scmp.eq.s32.totalorder %s24, 3
      %p110 = por %p108, %p109
      %p112 = scmp.ne.s32.totalorder %s97, %s111
      %p113 = scmp.eq.s32.totalorder %s24, 0
      %p114 = por %p112, %p113
      %s115 = ssub.s32 %s18, %s25
      %p116 = scmp.eq.s32.totalorder %s115, 0
      %s118 = sadd.s32 %s117, 1
      %s119 = scalar_select %p116, %s117, %s118
      %p122 = pneg %p116
      %p123 = scmp.eq.s32.totalorder %s18, 3
      %p124 = por %p122, %p123
      %p125 = scmp.ne.s32.totalorder %s117, %s120
      %p126 = scmp.eq.s32.totalorder %s18, 0
      %p127 = por %p125, %p126
      %p128 = scmp.ne.s32.totalorder %s117, %s120
      %p129 = scmp.eq.s32.totalorder %s23, 3
      %p130 = por %p128, %p129
      %p131 = scmp.ne.s32.totalorder %s120, %s121
      %p132 = scmp.eq.s32.totalorder %s23, 0
      %p133 = por %p131, %p132
      %p134 = scmp.ne.s32.totalorder %s120, %s121
      %p135 = scmp.eq.s32.totalorder %s24, 3
      %p136 = por %p134, %p135
      %p138 = scmp.ne.s32.totalorder %s121, %s137
      %p139 = scmp.eq.s32.totalorder %s24, 0
      %p140 = por %p138, %p139
      %p141 = scmp.le.s32.totalorder 1, %s18
      %p142 = scmp.lt.s32.totalorder %s18, 5
      %p143 = pnand %p141, %p142
      %p144 = pneg %p143
      // Predicated region
      $region9: #{tpu_custom_call.1} parent=5 // pred_check
        _
      $region10: #{tpu_custom_call.1} parent=5 // pred_check_branch
        %146 = sbr.rel (%p143) target = $region12
      $region11: #{tpu_custom_call.1} parent=5 // pred_region
        %s147 = ssub.s32 %s18, 1
        // Predicated region
        $region13: #{tpu_custom_call.1} parent=11 // pred_check
          %p148 = pneg %p65
        $region14: #{tpu_custom_call.1} parent=11 // pred_check_branch
          %150 = sbr.rel (%p148) target = $region16
        $region15: #{tpu_custom_call.1} parent=11 // pred_region
          %s152 = ssub.s32 24576, 24576
          %153 = vsyncadd [#allocation6], %s152
          %s154 = sshll.u32 [#allocation5], 4
          %s155 = int_to_ptr.vmem [resolvable:$true] %s154
          %160 = dma.hbm_to_vmem [thread:$0]  %s1, 24576, %s155, [#allocation6], 64, 64, 4
        $region16: #{tpu_custom_call.1} parent=11 // pred_fallthru
          _
        // Predicated region
        $region17: #{tpu_custom_call.1} parent=11 // pred_check
          %p161 = pneg %p86
        $region18: #{tpu_custom_call.1} parent=11 // pred_check_branch
          %163 = sbr.rel (%p161) target = $region20
        $region19: #{tpu_custom_call.1} parent=11 // pred_region
          %s165 = ssub.s32 1024, 1024
          %166 = vsyncadd [#allocation6], %s165
          %s167 = sshll.u32 [#allocation7], 4
          %s168 = int_to_ptr.vmem [resolvable:$true] %s167
          %173 = dma.hbm_to_vmem [thread:$0]  %s2, 1024, %s168, [#allocation6], 64, 64, 4
        $region20: #{tpu_custom_call.1} parent=11 // pred_fallthru
          _
        // Predicated region
        $region21: #{tpu_custom_call.1} parent=11 // pred_check
          %p174 = pneg %p107
        $region22: #{tpu_custom_call.1} parent=11 // pred_check_branch
          %176 = sbr.rel (%p174) target = $region24
        $region23: #{tpu_custom_call.1} parent=11 // pred_region
          %s178 = ssub.s32 1024, 1024
          %179 = vsyncadd [#allocation9], %s178
          %s180 = sshll.u32 [#allocation8], 4
          %s181 = int_to_ptr.vmem [resolvable:$true] %s180
          %186 = dma.hbm_to_vmem [thread:$0]  %s3, 1024, %s181, [#allocation9], 64, 64, 4
        $region24: #{tpu_custom_call.1} parent=11 // pred_fallthru
          _
      $region12: #{tpu_custom_call.1} parent=5 // pred_fallthru
        _
      %p187 = scmp.lt.s32.totalorder %s18, 4
      // Predicated region
      $region25: #{tpu_custom_call.1} parent=5 // pred_check
        %p188 = pneg %p187
      $region26: #{tpu_custom_call.1} parent=5 // pred_check_branch
        %190 = sbr.rel (%p188) target = $region28
      $region27: #{tpu_custom_call.1} parent=5 // pred_region
        // Predicated region
        $region29: #{tpu_custom_call.1} parent=27 // pred_check
          %p191 = pneg %p38
        $region30: #{tpu_custom_call.1} parent=27 // pred_check_branch
          %193 = sbr.rel (%p191) target = $region32
        $region31: #{tpu_custom_call.1} parent=27 // pred_region
          %s194 = sand.u32 %s28, 1
          %s195 = scalar_lea.sflag [#allocation3], %s194
          %s196 = sand.u32 %s28, 1
          %s197 = smul.addr %s196, 192
          %s198 = scalar_lea.vmem [#allocation2], %s197
          %s200 = ssub.s32 3072, 3072
          %201 = vsyncadd %s195, %s200
          %s202 = smul.addr %s18, 24
          %s203 = smul.addr %s202, 128
          %s204 = scalar_lea.hbm %s0, %s203
          %s206 = sshll.u32 %s198, 4
          %s207 = int_to_ptr.vmem [resolvable:$true] %s206
          %209 = dma.hbm_to_vmem [thread:$0]  %s204, 3072, %s207, %s195
        $region32: #{tpu_custom_call.1} parent=27 // pred_fallthru
          _
      $region28: #{tpu_custom_call.1} parent=5 // pred_fallthru
        _
      %p210 = scmp.le.s32.totalorder 1, %s18
      %p211 = scmp.lt.s32.totalorder %s18, 5
      %p212 = pnand %p210, %p211
      %p213 = pneg %p212
      // Predicated region
      $region33: #{tpu_custom_call.1} parent=5 // pred_check
        _
      $region34: #{tpu_custom_call.1} parent=5 // pred_check_branch
        %215 = sbr.rel (%p212) target = $region36
      $region35: #{tpu_custom_call.1} parent=5 // pred_region
        %s216 = ssub.s32 %s18, 1
        %s217 = sand.u32 %s31, 1
        %s218 = scalar_lea.sflag [#allocation3], %s217
        %s219 = sand.u32 %s31, 1
        %s220 = smul.addr %s219, 192
        %s221 = scalar_lea.vmem [#allocation2], %s220
        // Predicated region
        $region37: #{tpu_custom_call.1} parent=35 // pred_check
          %p222 = pneg %p44
        $region38: #{tpu_custom_call.1} parent=35 // pred_check_branch
          %224 = sbr.rel (%p222) target = $region40
        $region39: #{tpu_custom_call.1} parent=35 // pred_region
          %225 = dma.done %s218, 3072
        $region40: #{tpu_custom_call.1} parent=35 // pred_fallthru
          _
        // Predicated region
        $region41: #{tpu_custom_call.1} parent=35 // pred_check
          %p226 = pneg %p65
        $region42: #{tpu_custom_call.1} parent=35 // pred_check_branch
          %228 = sbr.rel (%p226) target = $region44
        $region43: #{tpu_custom_call.1} parent=35 // pred_region
          %229 = dma.done [#allocation6], 24576
        $region44: #{tpu_custom_call.1} parent=35 // pred_fallthru
          _
        // Predicated region
        $region45: #{tpu_custom_call.1} parent=35 // pred_check
          %p230 = pneg %p86
        $region46: #{tpu_custom_call.1} parent=35 // pred_check_branch
          %232 = sbr.rel (%p230) target = $region48
        $region47: #{tpu_custom_call.1} parent=35 // pred_region
          %233 = dma.done [#allocation6], 1024
        $region48: #{tpu_custom_call.1} parent=35 // pred_fallthru
          _
        // Predicated region
        $region49: #{tpu_custom_call.1} parent=35 // pred_check
          %p234 = pneg %p107
        $region50: #{tpu_custom_call.1} parent=35 // pred_check_branch
          %236 = sbr.rel (%p234) target = $region52
        $region51: #{tpu_custom_call.1} parent=35 // pred_region
          %237 = dma.done [#allocation9], 1024
        $region52: #{tpu_custom_call.1} parent=35 // pred_fallthru
          _
        %s238 = sand.u32 %s31, 1
        %s239 = scalar_lea.sflag [#allocation3], %s238
        %s240 = sand.u32 %s31, 1
        %s241 = smul.addr %s240, 192
        %s242 = scalar_lea.vmem [#allocation2], %s241
        %p243 = pneg %p44
        %p244 = pneg %p41
        %p245 = pneg %p65
        %p246 = pneg %p62
        %p247 = pneg %p86
        %p248 = pneg %p83
        %p249 = pneg %p107
        %p250 = pneg %p104
        %p251 = pneg %p133
        %p252 = pneg %p130
        %s253 = sand.u32 %s120, 1
        %s254 = scalar_lea.sflag [#allocation4], %s253
        %s255 = sand.u32 %s120, 1
        %s256 = smul.addr %s255, 8
        %s257 = scalar_lea.vmem [#allocation10], %s256
        %v259 = vld [vmem:[%s221] sm:$0xff]
        %v260 = vld [vmem:[%s221 + $0x8] sm:$0xff]
        %v261 = vld [vmem:[%s221 + $0x10] sm:$0xff]
        %v262 = vld [vmem:[%s221 + $0x18] sm:$0xff]
        %v263 = vld [vmem:[%s221 + $0x20] sm:$0xff]
        %v264 = vld [vmem:[%s221 + $0x28] sm:$0xff]
        %v265 = vld [vmem:[%s221 + $0x30] sm:$0xff]
        %v266 = vld [vmem:[%s221 + $0x38] sm:$0xff]
        %v267 = vld [vmem:[%s221 + $0x40] sm:$0xff]
        %v268 = vld [vmem:[%s221 + $0x48] sm:$0xff]
        %v269 = vld [vmem:[%s221 + $0x50] sm:$0xff]
        %v270 = vld [vmem:[%s221 + $0x58] sm:$0xff]
        %v271 = vld [vmem:[%s221 + $0x60] sm:$0xff]
        %v272 = vld [vmem:[%s221 + $0x68] sm:$0xff]
        %v273 = vld [vmem:[%s221 + $0x70] sm:$0xff]
        %v274 = vld [vmem:[%s221 + $0x78] sm:$0xff]
        %v275 = vld [vmem:[%s221 + $0x80] sm:$0xff]
        %v276 = vld [vmem:[%s221 + $0x88] sm:$0xff]
        %v277 = vld [vmem:[%s221 + $0x90] sm:$0xff]
        %v278 = vld [vmem:[%s221 + $0x98] sm:$0xff]
        %v279 = vld [vmem:[%s221 + $0xa0] sm:$0xff]
        %v280 = vld [vmem:[%s221 + $0xa8] sm:$0xff]
        %v281 = vld [vmem:[%s221 + $0xb0] sm:$0xff]
        %v282 = vld [vmem:[%s221 + $0xb8] sm:$0xff]
        %v283 = vpack.c.bf16 %v259, %v259
        %v284 = vpack.c.bf16 %v260, %v260
        %v285 = vpack.c.bf16 %v261, %v261
        %v286 = vpack.c.bf16 %v262, %v262
        %v287 = vpack.c.bf16 %v263, %v263
        %v288 = vpack.c.bf16 %v264, %v264
        %v289 = vpack.c.bf16 %v265, %v265
        %v290 = vpack.c.bf16 %v266, %v266
        %v291 = vpack.c.bf16 %v267, %v267
        %v292 = vpack.c.bf16 %v268, %v268
        %v293 = vpack.c.bf16 %v269, %v269
        %v294 = vpack.c.bf16 %v270, %v270
        %v295 = vpack.c.bf16 %v271, %v271
        %v296 = vpack.c.bf16 %v272, %v272
        %v297 = vpack.c.bf16 %v273, %v273
        %v298 = vpack.c.bf16 %v274, %v274
        %v299 = vpack.c.bf16 %v275, %v275
        %v300 = vpack.c.bf16 %v276, %v276
        %v301 = vpack.c.bf16 %v277, %v277
        %v302 = vpack.c.bf16 %v278, %v278
        %v303 = vpack.c.bf16 %v279, %v279
        %v304 = vpack.c.bf16 %v280, %v280
        %v305 = vpack.c.bf16 %v281, %v281
        %v306 = vpack.c.bf16 %v282, %v282
        %v307 = vld [vmem:[#allocation5] sm:$0xf]
        %v308 = vld [vmem:[#allocation5 + $0x4] sm:$0xf]
        %v309 = vld [vmem:[#allocation5 + $0x8] sm:$0xf]
        %v310 = vld [vmem:[#allocation5 + $0xc] sm:$0xf]
        %v311 = vld [vmem:[#allocation5 + $0x10] sm:$0xf]
        %v312 = vld [vmem:[#allocation5 + $0x14] sm:$0xf]
        %v313 = vld [vmem:[#allocation5 + $0x18] sm:$0xf]
        %v314 = vld [vmem:[#allocation5 + $0x1c] sm:$0xf]
        %v315 = vld [vmem:[#allocation5 + $0x20] sm:$0xf]
        %v316 = vld [vmem:[#allocation5 + $0x24] sm:$0xf]
        %v317 = vld [vmem:[#allocation5 + $0x28] sm:$0xf]
        %v318 = vld [vmem:[#allocation5 + $0x2c] sm:$0xf]
        %v319 = vld [vmem:[#allocation5 + $0x30] sm:$0xf]
        %v320 = vld [vmem:[#allocation5 + $0x34] sm:$0xf]
        %v321 = vld [vmem:[#allocation5 + $0x38] sm:$0xf]
        %v322 = vld [vmem:[#allocation5 + $0x3c] sm:$0xf]
        %v323 = vld [vmem:[#allocation5 + $0x40] sm:$0xf]
        %v324 = vld [vmem:[#allocation5 + $0x44] sm:$0xf]
        %v325 = vld [vmem:[#allocation5 + $0x48] sm:$0xf]
        %v326 = vld [vmem:[#allocation5 + $0x4c] sm:$0xf]
        %v327 = vld [vmem:[#allocation5 + $0x50] sm:$0xf]
        %v328 = vld [vmem:[#allocation5 + $0x54] sm:$0xf]
        %v329 = vld [vmem:[#allocation5 + $0x58] sm:$0xf]
        %v330 = vld [vmem:[#allocation5 + $0x5c] sm:$0xf]
        %v331 = vld [vmem:[#allocation5 + $0x60] sm:$0xf]
        %v332 = vld [vmem:[#allocation5 + $0x64] sm:$0xf]
        %v333 = vld [vmem:[#allocation5 + $0x68] sm:$0xf]
        %v334 = vld [vmem:[#allocation5 + $0x6c] sm:$0xf]
        %v335 = vld [vmem:[#allocation5 + $0x70] sm:$0xf]
        %v336 = vld [vmem:[#allocation5 + $0x74] sm:$0xf]
        %v337 = vld [vmem:[#allocation5 + $0x78] sm:$0xf]
        %v338 = vld [vmem:[#allocation5 + $0x7c] sm:$0xf]
        %v339 = vld [vmem:[#allocation5 + $0x80] sm:$0xf]
        %v340 = vld [vmem:[#allocation5 + $0x84] sm:$0xf]
        %v341 = vld [vmem:[#allocation5 + $0x88] sm:$0xf]
        %v342 = vld [vmem:[#allocation5 + $0x8c] sm:$0xf]
        %v343 = vld [vmem:[#allocation5 + $0x90] sm:$0xf]
        %v344 = vld [vmem:[#allocation5 + $0x94] sm:$0xf]
        %v345 = vld [vmem:[#allocation5 + $0x98] sm:$0xf]
        %v346 = vld [vmem:[#allocation5 + $0x9c] sm:$0xf]
        %v347 = vld [vmem:[#allocation5 + $0xa0] sm:$0xf]
        %v348 = vld [vmem:[#allocation5 + $0xa4] sm:$0xf]
        %v349 = vld [vmem:[#allocation5 + $0xa8] sm:$0xf]
        %v350 = vld [vmem:[#allocation5 + $0xac] sm:$0xf]
        %v351 = vld [vmem:[#allocation5 + $0xb0] sm:$0xf]
        %v352 = vld [vmem:[#allocation5 + $0xb4] sm:$0xf]
        %v353 = vld [vmem:[#allocation5 + $0xb8] sm:$0xf]
        %v354 = vld [vmem:[#allocation5 + $0xbc] sm:$0xf]
        %v355 = vld [vmem:[#allocation5 + $0xc0] sm:$0xf]
        %v356 = vld [vmem:[#allocation5 + $0xc4] sm:$0xf]
        %v357 = vld [vmem:[#allocation5 + $0xc8] sm:$0xf]
        %v358 = vld [vmem:[#allocation5 + $0xcc] sm:$0xf]
        %v359 = vld [vmem:[#allocation5 + $0xd0] sm:$0xf]
        %v360 = vld [vmem:[#allocation5 + $0xd4] sm:$0xf]
        %v361 = vld [vmem:[#allocation5 + $0xd8] sm:$0xf]
        %v362 = vld [vmem:[#allocation5 + $0xdc] sm:$0xf]
        %v363 = vld [vmem:[#allocation5 + $0xe0] sm:$0xf]
        %v364 = vld [vmem:[#allocation5 + $0xe4] sm:$0xf]
        %v365 = vld [vmem:[#allocation5 + $0xe8] sm:$0xf]
        %v366 = vld [vmem:[#allocation5 + $0xec] sm:$0xf]
        %v367 = vld [vmem:[#allocation5 + $0xf0] sm:$0xf]
        %v368 = vld [vmem:[#allocation5 + $0xf4] sm:$0xf]
        %v369 = vld [vmem:[#allocation5 + $0xf8] sm:$0xf]
        %v370 = vld [vmem:[#allocation5 + $0xfc] sm:$0xf]
        %v371 = vld [vmem:[#allocation5 + $0x100] sm:$0xf]
        %v372 = vld [vmem:[#allocation5 + $0x104] sm:$0xf]
        %v373 = vld [vmem:[#allocation5 + $0x108] sm:$0xf]
        %v374 = vld [vmem:[#allocation5 + $0x10c] sm:$0xf]
        %v375 = vld [vmem:[#allocation5 + $0x110] sm:$0xf]
        %v376 = vld [vmem:[#allocation5 + $0x114] sm:$0xf]
        %v377 = vld [vmem:[#allocation5 + $0x118] sm:$0xf]
        %v378 = vld [vmem:[#allocation5 + $0x11c] sm:$0xf]
        %v379 = vld [vmem:[#allocation5 + $0x120] sm:$0xf]
        %v380 = vld [vmem:[#allocation5 + $0x124] sm:$0xf]
        %v381 = vld [vmem:[#allocation5 + $0x128] sm:$0xf]
        %v382 = vld [vmem:[#allocation5 + $0x12c] sm:$0xf]
        %v383 = vld [vmem:[#allocation5 + $0x130] sm:$0xf]
        %v384 = vld [vmem:[#allocation5 + $0x134] sm:$0xf]
        %v385 = vld [vmem:[#allocation5 + $0x138] sm:$0xf]
        %v386 = vld [vmem:[#allocation5 + $0x13c] sm:$0xf]
        %v387 = vld [vmem:[#allocation5 + $0x140] sm:$0xf]
        %v388 = vld [vmem:[#allocation5 + $0x144] sm:$0xf]
        %v389 = vld [vmem:[#allocation5 + $0x148] sm:$0xf]
        %v390 = vld [vmem:[#allocation5 + $0x14c] sm:$0xf]
        %v391 = vld [vmem:[#allocation5 + $0x150] sm:$0xf]
        %v392 = vld [vmem:[#allocation5 + $0x154] sm:$0xf]
        %v393 = vld [vmem:[#allocation5 + $0x158] sm:$0xf]
        %v394 = vld [vmem:[#allocation5 + $0x15c] sm:$0xf]
        %v395 = vld [vmem:[#allocation5 + $0x160] sm:$0xf]
        %v396 = vld [vmem:[#allocation5 + $0x164] sm:$0xf]
        %v397 = vld [vmem:[#allocation5 + $0x168] sm:$0xf]
        %v398 = vld [vmem:[#allocation5 + $0x16c] sm:$0xf]
        %v399 = vld [vmem:[#allocation5 + $0x170] sm:$0xf]
        %v400 = vld [vmem:[#allocation5 + $0x174] sm:$0xf]
        %v401 = vld [vmem:[#allocation5 + $0x178] sm:$0xf]
        %v402 = vld [vmem:[#allocation5 + $0x17c] sm:$0xf]
        %v403 = vld [vmem:[#allocation5 + $0x180] sm:$0xf]
        %v404 = vld [vmem:[#allocation5 + $0x184] sm:$0xf]
        %v405 = vld [vmem:[#allocation5 + $0x188] sm:$0xf]
        %v406 = vld [vmem:[#allocation5 + $0x18c] sm:$0xf]
        %v407 = vld [vmem:[#allocation5 + $0x190] sm:$0xf]
        %v408 = vld [vmem:[#allocation5 + $0x194] sm:$0xf]
        %v409 = vld [vmem:[#allocation5 + $0x198] sm:$0xf]
        %v410 = vld [vmem:[#allocation5 + $0x19c] sm:$0xf]
        %v411 = vld [vmem:[#allocation5 + $0x1a0] sm:$0xf]
        %v412 = vld [vmem:[#allocation5 + $0x1a4] sm:$0xf]
        %v413 = vld [vmem:[#allocation5 + $0x1a8] sm:$0xf]
        %v414 = vld [vmem:[#allocation5 + $0x1ac] sm:$0xf]
        %v415 = vld [vmem:[#allocation5 + $0x1b0] sm:$0xf]
        %v416 = vld [vmem:[#allocation5 + $0x1b4] sm:$0xf]
        %v417 = vld [vmem:[#allocation5 + $0x1b8] sm:$0xf]
        %v418 = vld [vmem:[#allocation5 + $0x1bc] sm:$0xf]
        %v419 = vld [vmem:[#allocation5 + $0x1c0] sm:$0xf]
        %v420 = vld [vmem:[#allocation5 + $0x1c4] sm:$0xf]
        %v421 = vld [vmem:[#allocation5 + $0x1c8] sm:$0xf]
        %v422 = vld [vmem:[#allocation5 + $0x1cc] sm:$0xf]
        %v423 = vld [vmem:[#allocation5 + $0x1d0] sm:$0xf]
        %v424 = vld [vmem:[#allocation5 + $0x1d4] sm:$0xf]
        %v425 = vld [vmem:[#allocation5 + $0x1d8] sm:$0xf]
        %v426 = vld [vmem:[#allocation5 + $0x1dc] sm:$0xf]
        %v427 = vld [vmem:[#allocation5 + $0x1e0] sm:$0xf]
        %v428 = vld [vmem:[#allocation5 + $0x1e4] sm:$0xf]
        %v429 = vld [vmem:[#allocation5 + $0x1e8] sm:$0xf]
        %v430 = vld [vmem:[#allocation5 + $0x1ec] sm:$0xf]
        %v431 = vld [vmem:[#allocation5 + $0x1f0] sm:$0xf]
        %v432 = vld [vmem:[#allocation5 + $0x1f4] sm:$0xf]
        %v433 = vld [vmem:[#allocation5 + $0x1f8] sm:$0xf]
        %v434 = vld [vmem:[#allocation5 + $0x1fc] sm:$0xf]
        %v435 = vld [vmem:[#allocation5 + $0x200] sm:$0xf]
        %v436 = vld [vmem:[#allocation5 + $0x204] sm:$0xf]
        %v437 = vld [vmem:[#allocation5 + $0x208] sm:$0xf]
        %v438 = vld [vmem:[#allocation5 + $0x20c] sm:$0xf]
        %v439 = vld [vmem:[#allocation5 + $0x210] sm:$0xf]
        %v440 = vld [vmem:[#allocation5 + $0x214] sm:$0xf]
        %v441 = vld [vmem:[#allocation5 + $0x218] sm:$0xf]
        %v442 = vld [vmem:[#allocation5 + $0x21c] sm:$0xf]
        %v443 = vld [vmem:[#allocation5 + $0x220] sm:$0xf]
        %v444 = vld [vmem:[#allocation5 + $0x224] sm:$0xf]
        %v445 = vld [vmem:[#allocation5 + $0x228] sm:$0xf]
        %v446 = vld [vmem:[#allocation5 + $0x22c] sm:$0xf]
        %v447 = vld [vmem:[#allocation5 + $0x230] sm:$0xf]
        %v448 = vld [vmem:[#allocation5 + $0x234] sm:$0xf]
        %v449 = vld [vmem:[#allocation5 + $0x238] sm:$0xf]
        %v450 = vld [vmem:[#allocation5 + $0x23c] sm:$0xf]
        %v451 = vld [vmem:[#allocation5 + $0x240] sm:$0xf]
        %v452 = vld [vmem:[#allocation5 + $0x244] sm:$0xf]
        %v453 = vld [vmem:[#allocation5 + $0x248] sm:$0xf]
        %v454 = vld [vmem:[#allocation5 + $0x24c] sm:$0xf]
        %v455 = vld [vmem:[#allocation5 + $0x250] sm:$0xf]
        %v456 = vld [vmem:[#allocation5 + $0x254] sm:$0xf]
        %v457 = vld [vmem:[#allocation5 + $0x258] sm:$0xf]
        %v458 = vld [vmem:[#allocation5 + $0x25c] sm:$0xf]
        %v459 = vld [vmem:[#allocation5 + $0x260] sm:$0xf]
        %v460 = vld [vmem:[#allocation5 + $0x264] sm:$0xf]
        %v461 = vld [vmem:[#allocation5 + $0x268] sm:$0xf]
        %v462 = vld [vmem:[#allocation5 + $0x26c] sm:$0xf]
        %v463 = vld [vmem:[#allocation5 + $0x270] sm:$0xf]
        %v464 = vld [vmem:[#allocation5 + $0x274] sm:$0xf]
        %v465 = vld [vmem:[#allocation5 + $0x278] sm:$0xf]
        %v466 = vld [vmem:[#allocation5 + $0x27c] sm:$0xf]
        %v467 = vld [vmem:[#allocation5 + $0x280] sm:$0xf]
        %v468 = vld [vmem:[#allocation5 + $0x284] sm:$0xf]
        %v469 = vld [vmem:[#allocation5 + $0x288] sm:$0xf]
        %v470 = vld [vmem:[#allocation5 + $0x28c] sm:$0xf]
        %v471 = vld [vmem:[#allocation5 + $0x290] sm:$0xf]
        %v472 = vld [vmem:[#allocation5 + $0x294] sm:$0xf]
        %v473 = vld [vmem:[#allocation5 + $0x298] sm:$0xf]
        %v474 = vld [vmem:[#allocation5 + $0x29c] sm:$0xf]
        %v475 = vld [vmem:[#allocation5 + $0x2a0] sm:$0xf]
        %v476 = vld [vmem:[#allocation5 + $0x2a4] sm:$0xf]
        %v477 = vld [vmem:[#allocation5 + $0x2a8] sm:$0xf]
        %v478 = vld [vmem:[#allocation5 + $0x2ac] sm:$0xf]
        %v479 = vld [vmem:[#allocation5 + $0x2b0] sm:$0xf]
        %v480 = vld [vmem:[#allocation5 + $0x2b4] sm:$0xf]
        %v481 = vld [vmem:[#allocation5 + $0x2b8] sm:$0xf]
        %v482 = vld [vmem:[#allocation5 + $0x2bc] sm:$0xf]
        %v483 = vld [vmem:[#allocation5 + $0x2c0] sm:$0xf]
        %v484 = vld [vmem:[#allocation5 + $0x2c4] sm:$0xf]
        %v485 = vld [vmem:[#allocation5 + $0x2c8] sm:$0xf]
        %v486 = vld [vmem:[#allocation5 + $0x2cc] sm:$0xf]
        %v487 = vld [vmem:[#allocation5 + $0x2d0] sm:$0xf]
        %v488 = vld [vmem:[#allocation5 + $0x2d4] sm:$0xf]
        %v489 = vld [vmem:[#allocation5 + $0x2d8] sm:$0xf]
        %v490 = vld [vmem:[#allocation5 + $0x2dc] sm:$0xf]
        %v491 = vld [vmem:[#allocation5 + $0x2e0] sm:$0xf]
        %v492 = vld [vmem:[#allocation5 + $0x2e4] sm:$0xf]
        %v493 = vld [vmem:[#allocation5 + $0x2e8] sm:$0xf]
        %v494 = vld [vmem:[#allocation5 + $0x2ec] sm:$0xf]
        %v495 = vld [vmem:[#allocation5 + $0x2f0] sm:$0xf]
        %v496 = vld [vmem:[#allocation5 + $0x2f4] sm:$0xf]
        %v497 = vld [vmem:[#allocation5 + $0x2f8] sm:$0xf]
        %v498 = vld [vmem:[#allocation5 + $0x2fc] sm:$0xf]
        %v499 = vld [vmem:[#allocation5 + $0x300] sm:$0xf]
        %v500 = vld [vmem:[#allocation5 + $0x304] sm:$0xf]
        %v501 = vld [vmem:[#allocation5 + $0x308] sm:$0xf]
        %v502 = vld [vmem:[#allocation5 + $0x30c] sm:$0xf]
        %v503 = vld [vmem:[#allocation5 + $0x310] sm:$0xf]
        %v504 = vld [vmem:[#allocation5 + $0x314] sm:$0xf]
        %v505 = vld [vmem:[#allocation5 + $0x318] sm:$0xf]
        %v506 = vld [vmem:[#allocation5 + $0x31c] sm:$0xf]
        %v507 = vld [vmem:[#allocation5 + $0x320] sm:$0xf]
        %v508 = vld [vmem:[#allocation5 + $0x324] sm:$0xf]
        %v509 = vld [vmem:[#allocation5 + $0x328] sm:$0xf]
        %v510 = vld [vmem:[#allocation5 + $0x32c] sm:$0xf]
        %v511 = vld [vmem:[#allocation5 + $0x330] sm:$0xf]
        %v512 = vld [vmem:[#allocation5 + $0x334] sm:$0xf]
        %v513 = vld [vmem:[#allocation5 + $0x338] sm:$0xf]
        %v514 = vld [vmem:[#allocation5 + $0x33c] sm:$0xf]
        %v515 = vld [vmem:[#allocation5 + $0x340] sm:$0xf]
        %v516 = vld [vmem:[#allocation5 + $0x344] sm:$0xf]
        %v517 = vld [vmem:[#allocation5 + $0x348] sm:$0xf]
        %v518 = vld [vmem:[#allocation5 + $0x34c] sm:$0xf]
        %v519 = vld [vmem:[#allocation5 + $0x350] sm:$0xf]
        %v520 = vld [vmem:[#allocation5 + $0x354] sm:$0xf]
        %v521 = vld [vmem:[#allocation5 + $0x358] sm:$0xf]
        %v522 = vld [vmem:[#allocation5 + $0x35c] sm:$0xf]
        %v523 = vld [vmem:[#allocation5 + $0x360] sm:$0xf]
        %v524 = vld [vmem:[#allocation5 + $0x364] sm:$0xf]
        %v525 = vld [vmem:[#allocation5 + $0x368] sm:$0xf]
        %v526 = vld [vmem:[#allocation5 + $0x36c] sm:$0xf]
        %v527 = vld [vmem:[#allocation5 + $0x370] sm:$0xf]
        %v528 = vld [vmem:[#allocation5 + $0x374] sm:$0xf]
        %v529 = vld [vmem:[#allocation5 + $0x378] sm:$0xf]
        %v530 = vld [vmem:[#allocation5 + $0x37c] sm:$0xf]
        %v531 = vld [vmem:[#allocation5 + $0x380] sm:$0xf]
        %v532 = vld [vmem:[#allocation5 + $0x384] sm:$0xf]
        %v533 = vld [vmem:[#allocation5 + $0x388] sm:$0xf]
        %v534 = vld [vmem:[#allocation5 + $0x38c] sm:$0xf]
        %v535 = vld [vmem:[#allocation5 + $0x390] sm:$0xf]
        %v536 = vld [vmem:[#allocation5 + $0x394] sm:$0xf]
        %v537 = vld [vmem:[#allocation5 + $0x398] sm:$0xf]
        %v538 = vld [vmem:[#allocation5 + $0x39c] sm:$0xf]
        %v539 = vld [vmem:[#allocation5 + $0x3a0] sm:$0xf]
        %v540 = vld [vmem:[#allocation5 + $0x3a4] sm:$0xf]
        %v541 = vld [vmem:[#allocation5 + $0x3a8] sm:$0xf]
        %v542 = vld [vmem:[#allocation5 + $0x3ac] sm:$0xf]
        %v543 = vld [vmem:[#allocation5 + $0x3b0] sm:$0xf]
        %v544 = vld [vmem:[#allocation5 + $0x3b4] sm:$0xf]
        %v545 = vld [vmem:[#allocation5 + $0x3b8] sm:$0xf]
        %v546 = vld [vmem:[#allocation5 + $0x3bc] sm:$0xf]
        %v547 = vld [vmem:[#allocation5 + $0x3c0] sm:$0xf]
        %v548 = vld [vmem:[#allocation5 + $0x3c4] sm:$0xf]
        %v549 = vld [vmem:[#allocation5 + $0x3c8] sm:$0xf]
        %v550 = vld [vmem:[#allocation5 + $0x3cc] sm:$0xf]
        %v551 = vld [vmem:[#allocation5 + $0x3d0] sm:$0xf]
        %v552 = vld [vmem:[#allocation5 + $0x3d4] sm:$0xf]
        %v553 = vld [vmem:[#allocation5 + $0x3d8] sm:$0xf]
        %v554 = vld [vmem:[#allocation5 + $0x3dc] sm:$0xf]
        %v555 = vld [vmem:[#allocation5 + $0x3e0] sm:$0xf]
        %v556 = vld [vmem:[#allocation5 + $0x3e4] sm:$0xf]
        %v557 = vld [vmem:[#allocation5 + $0x3e8] sm:$0xf]
        %v558 = vld [vmem:[#allocation5 + $0x3ec] sm:$0xf]
        %v559 = vld [vmem:[#allocation5 + $0x3f0] sm:$0xf]
        %v560 = vld [vmem:[#allocation5 + $0x3f4] sm:$0xf]
        %v561 = vld [vmem:[#allocation5 + $0x3f8] sm:$0xf]
        %v562 = vld [vmem:[#allocation5 + $0x3fc] sm:$0xf]
        %v563 = vld [vmem:[#allocation5 + $0x400] sm:$0xf]
        %v564 = vld [vmem:[#allocation5 + $0x404] sm:$0xf]
        %v565 = vld [vmem:[#allocation5 + $0x408] sm:$0xf]
        %v566 = vld [vmem:[#allocation5 + $0x40c] sm:$0xf]
        %v567 = vld [vmem:[#allocation5 + $0x410] sm:$0xf]
        %v568 = vld [vmem:[#allocation5 + $0x414] sm:$0xf]
        %v569 = vld [vmem:[#allocation5 + $0x418] sm:$0xf]
        %v570 = vld [vmem:[#allocation5 + $0x41c] sm:$0xf]
        %v571 = vld [vmem:[#allocation5 + $0x420] sm:$0xf]
        %v572 = vld [vmem:[#allocation5 + $0x424] sm:$0xf]
        %v573 = vld [vmem:[#allocation5 + $0x428] sm:$0xf]
        %v574 = vld [vmem:[#allocation5 + $0x42c] sm:$0xf]
        %v575 = vld [vmem:[#allocation5 + $0x430] sm:$0xf]
        %v576 = vld [vmem:[#allocation5 + $0x434] sm:$0xf]
        %v577 = vld [vmem:[#allocation5 + $0x438] sm:$0xf]
        %v578 = vld [vmem:[#allocation5 + $0x43c] sm:$0xf]
        %v579 = vld [vmem:[#allocation5 + $0x440] sm:$0xf]
        %v580 = vld [vmem:[#allocation5 + $0x444] sm:$0xf]
        %v581 = vld [vmem:[#allocation5 + $0x448] sm:$0xf]
        %v582 = vld [vmem:[#allocation5 + $0x44c] sm:$0xf]
        %v583 = vld [vmem:[#allocation5 + $0x450] sm:$0xf]
        %v584 = vld [vmem:[#allocation5 + $0x454] sm:$0xf]
        %v585 = vld [vmem:[#allocation5 + $0x458] sm:$0xf]
        %v586 = vld [vmem:[#allocation5 + $0x45c] sm:$0xf]
        %v587 = vld [vmem:[#allocation5 + $0x460] sm:$0xf]
        %v588 = vld [vmem:[#allocation5 + $0x464] sm:$0xf]
        %v589 = vld [vmem:[#allocation5 + $0x468] sm:$0xf]
        %v590 = vld [vmem:[#allocation5 + $0x46c] sm:$0xf]
        %v591 = vld [vmem:[#allocation5 + $0x470] sm:$0xf]
        %v592 = vld [vmem:[#allocation5 + $0x474] sm:$0xf]
        %v593 = vld [vmem:[#allocation5 + $0x478] sm:$0xf]
        %v594 = vld [vmem:[#allocation5 + $0x47c] sm:$0xf]
        %v595 = vld [vmem:[#allocation5 + $0x480] sm:$0xf]
        %v596 = vld [vmem:[#allocation5 + $0x484] sm:$0xf]
        %v597 = vld [vmem:[#allocation5 + $0x488] sm:$0xf]
        %v598 = vld [vmem:[#allocation5 + $0x48c] sm:$0xf]
        %v599 = vld [vmem:[#allocation5 + $0x490] sm:$0xf]
        %v600 = vld [vmem:[#allocation5 + $0x494] sm:$0xf]
        %v601 = vld [vmem:[#allocation5 + $0x498] sm:$0xf]
        %v602 = vld [vmem:[#allocation5 + $0x49c] sm:$0xf]
        %v603 = vld [vmem:[#allocation5 + $0x4a0] sm:$0xf]
        %v604 = vld [vmem:[#allocation5 + $0x4a4] sm:$0xf]
        %v605 = vld [vmem:[#allocation5 + $0x4a8] sm:$0xf]
        %v606 = vld [vmem:[#allocation5 + $0x4ac] sm:$0xf]
        %v607 = vld [vmem:[#allocation5 + $0x4b0] sm:$0xf]
        %v608 = vld [vmem:[#allocation5 + $0x4b4] sm:$0xf]
        %v609 = vld [vmem:[#allocation5 + $0x4b8] sm:$0xf]
        %v610 = vld [vmem:[#allocation5 + $0x4bc] sm:$0xf]
        %v611 = vld [vmem:[#allocation5 + $0x4c0] sm:$0xf]
        %v612 = vld [vmem:[#allocation5 + $0x4c4] sm:$0xf]
        %v613 = vld [vmem:[#allocation5 + $0x4c8] sm:$0xf]
        %v614 = vld [vmem:[#allocation5 + $0x4cc] sm:$0xf]
        %v615 = vld [vmem:[#allocation5 + $0x4d0] sm:$0xf]
        %v616 = vld [vmem:[#allocation5 + $0x4d4] sm:$0xf]
        %v617 = vld [vmem:[#allocation5 + $0x4d8] sm:$0xf]
        %v618 = vld [vmem:[#allocation5 + $0x4dc] sm:$0xf]
        %v619 = vld [vmem:[#allocation5 + $0x4e0] sm:$0xf]
        %v620 = vld [vmem:[#allocation5 + $0x4e4] sm:$0xf]
        %v621 = vld [vmem:[#allocation5 + $0x4e8] sm:$0xf]
        %v622 = vld [vmem:[#allocation5 + $0x4ec] sm:$0xf]
        %v623 = vld [vmem:[#allocation5 + $0x4f0] sm:$0xf]
        %v624 = vld [vmem:[#allocation5 + $0x4f4] sm:$0xf]
        %v625 = vld [vmem:[#allocation5 + $0x4f8] sm:$0xf]
        %v626 = vld [vmem:[#allocation5 + $0x4fc] sm:$0xf]
        %v627 = vld [vmem:[#allocation5 + $0x500] sm:$0xf]
        %v628 = vld [vmem:[#allocation5 + $0x504] sm:$0xf]
        %v629 = vld [vmem:[#allocation5 + $0x508] sm:$0xf]
        %v630 = vld [vmem:[#allocation5 + $0x50c] sm:$0xf]
        %v631 = vld [vmem:[#allocation5 + $0x510] sm:$0xf]
        %v632 = vld [vmem:[#allocation5 + $0x514] sm:$0xf]
        %v633 = vld [vmem:[#allocation5 + $0x518] sm:$0xf]
        %v634 = vld [vmem:[#allocation5 + $0x51c] sm:$0xf]
        %v635 = vld [vmem:[#allocation5 + $0x520] sm:$0xf]
        %v636 = vld [vmem:[#allocation5 + $0x524] sm:$0xf]
        %v637 = vld [vmem:[#allocation5 + $0x528] sm:$0xf]
        %v638 = vld [vmem:[#allocation5 + $0x52c] sm:$0xf]
        %v639 = vld [vmem:[#allocation5 + $0x530] sm:$0xf]
        %v640 = vld [vmem:[#allocation5 + $0x534] sm:$0xf]
        %v641 = vld [vmem:[#allocation5 + $0x538] sm:$0xf]
        %v642 = vld [vmem:[#allocation5 + $0x53c] sm:$0xf]
        %v643 = vld [vmem:[#allocation5 + $0x540] sm:$0xf]
        %v644 = vld [vmem:[#allocation5 + $0x544] sm:$0xf]
        %v645 = vld [vmem:[#allocation5 + $0x548] sm:$0xf]
        %v646 = vld [vmem:[#allocation5 + $0x54c] sm:$0xf]
        %v647 = vld [vmem:[#allocation5 + $0x550] sm:$0xf]
        %v648 = vld [vmem:[#allocation5 + $0x554] sm:$0xf]
        %v649 = vld [vmem:[#allocation5 + $0x558] sm:$0xf]
        %v650 = vld [vmem:[#allocation5 + $0x55c] sm:$0xf]
        %v651 = vld [vmem:[#allocation5 + $0x560] sm:$0xf]
        %v652 = vld [vmem:[#allocation5 + $0x564] sm:$0xf]
        %v653 = vld [vmem:[#allocation5 + $0x568] sm:$0xf]
        %v654 = vld [vmem:[#allocation5 + $0x56c] sm:$0xf]
        %v655 = vld [vmem:[#allocation5 + $0x570] sm:$0xf]
        %v656 = vld [vmem:[#allocation5 + $0x574] sm:$0xf]
        %v657 = vld [vmem:[#allocation5 + $0x578] sm:$0xf]
        %v658 = vld [vmem:[#allocation5 + $0x57c] sm:$0xf]
        %v659 = vld [vmem:[#allocation5 + $0x580] sm:$0xf]
        %v660 = vld [vmem:[#allocation5 + $0x584] sm:$0xf]
        %v661 = vld [vmem:[#allocation5 + $0x588] sm:$0xf]
        %v662 = vld [vmem:[#allocation5 + $0x58c] sm:$0xf]
        %v663 = vld [vmem:[#allocation5 + $0x590] sm:$0xf]
        %v664 = vld [vmem:[#allocation5 + $0x594] sm:$0xf]
        %v665 = vld [vmem:[#allocation5 + $0x598] sm:$0xf]
        %v666 = vld [vmem:[#allocation5 + $0x59c] sm:$0xf]
        %v667 = vld [vmem:[#allocation5 + $0x5a0] sm:$0xf]
        %v668 = vld [vmem:[#allocation5 + $0x5a4] sm:$0xf]
        %v669 = vld [vmem:[#allocation5 + $0x5a8] sm:$0xf]
        %v670 = vld [vmem:[#allocation5 + $0x5ac] sm:$0xf]
        %v671 = vld [vmem:[#allocation5 + $0x5b0] sm:$0xf]
        %v672 = vld [vmem:[#allocation5 + $0x5b4] sm:$0xf]
        %v673 = vld [vmem:[#allocation5 + $0x5b8] sm:$0xf]
        %v674 = vld [vmem:[#allocation5 + $0x5bc] sm:$0xf]
        %v675 = vld [vmem:[#allocation5 + $0x5c0] sm:$0xf]
        %v676 = vld [vmem:[#allocation5 + $0x5c4] sm:$0xf]
        %v677 = vld [vmem:[#allocation5 + $0x5c8] sm:$0xf]
        %v678 = vld [vmem:[#allocation5 + $0x5cc] sm:$0xf]
        %v679 = vld [vmem:[#allocation5 + $0x5d0] sm:$0xf]
        %v680 = vld [vmem:[#allocation5 + $0x5d4] sm:$0xf]
        %v681 = vld [vmem:[#allocation5 + $0x5d8] sm:$0xf]
        %v682 = vld [vmem:[#allocation5 + $0x5dc] sm:$0xf]
        %v683 = vld [vmem:[#allocation5 + $0x5e0] sm:$0xf]
        %v684 = vld [vmem:[#allocation5 + $0x5e4] sm:$0xf]
        %v685 = vld [vmem:[#allocation5 + $0x5e8] sm:$0xf]
        %v686 = vld [vmem:[#allocation5 + $0x5ec] sm:$0xf]
        %v687 = vld [vmem:[#allocation5 + $0x5f0] sm:$0xf]
        %v688 = vld [vmem:[#allocation5 + $0x5f4] sm:$0xf]
        %v689 = vld [vmem:[#allocation5 + $0x5f8] sm:$0xf]
        %v690 = vld [vmem:[#allocation5 + $0x5fc] sm:$0xf]
        %v1075 = vunpack.c.l.b16 %v307
        %v1076 = vunpack.c.l.b16 %v308
        %v1077 = vunpack.c.l.b16 %v309
        %v1078 = vunpack.c.l.b16 %v310
        %v1079 = vunpack.c.l.b16 %v311
        %v1080 = vunpack.c.l.b16 %v312
        %v1081 = vunpack.c.l.b16 %v313
        %v1082 = vunpack.c.l.b16 %v314
        %v1083 = vunpack.c.l.b16 %v315
        %v1084 = vunpack.c.l.b16 %v316
        %v1085 = vunpack.c.l.b16 %v317
        %v1086 = vunpack.c.l.b16 %v318
        %v1087 = vunpack.c.l.b16 %v319
        %v1088 = vunpack.c.l.b16 %v320
        %v1089 = vunpack.c.l.b16 %v321
        %v1090 = vunpack.c.l.b16 %v322
        %v1091 = vunpack.c.l.b16 %v323
        %v1092 = vunpack.c.l.b16 %v324
        %v1093 = vunpack.c.l.b16 %v325
        %v1094 = vunpack.c.l.b16 %v326
        %v1095 = vunpack.c.l.b16 %v327
        %v1096 = vunpack.c.l.b16 %v328
        %v1097 = vunpack.c.l.b16 %v329
        %v1098 = vunpack.c.l.b16 %v330
        %v1099 = vunpack.c.l.b16 %v331
        %v1100 = vunpack.c.l.b16 %v332
        %v1101 = vunpack.c.l.b16 %v333
        %v1102 = vunpack.c.l.b16 %v334
        %v1103 = vunpack.c.l.b16 %v335
        %v1104 = vunpack.c.l.b16 %v336
        %v1105 = vunpack.c.l.b16 %v337
        %v1106 = vunpack.c.l.b16 %v338
        %v1107 = vunpack.c.l.b16 %v339
        %v1108 = vunpack.c.l.b16 %v340
        %v1109 = vunpack.c.l.b16 %v341
        %v1110 = vunpack.c.l.b16 %v342
        %v1111 = vunpack.c.l.b16 %v343
        %v1112 = vunpack.c.l.b16 %v344
        %v1113 = vunpack.c.l.b16 %v345
        %v1114 = vunpack.c.l.b16 %v346
        %v1115 = vunpack.c.l.b16 %v347
        %v1116 = vunpack.c.l.b16 %v348
        %v1117 = vunpack.c.l.b16 %v349
        %v1118 = vunpack.c.l.b16 %v350
        %v1119 = vunpack.c.l.b16 %v351
        %v1120 = vunpack.c.l.b16 %v352
        %v1121 = vunpack.c.l.b16 %v353
        %v1122 = vunpack.c.l.b16 %v354
        %v1123 = vunpack.c.l.b16 %v355
        %v1124 = vunpack.c.l.b16 %v356
        %v1125 = vunpack.c.l.b16 %v357
        %v1126 = vunpack.c.l.b16 %v358
        %v1127 = vunpack.c.l.b16 %v359
        %v1128 = vunpack.c.l.b16 %v360
        %v1129 = vunpack.c.l.b16 %v361
        %v1130 = vunpack.c.l.b16 %v362
        %v1131 = vunpack.c.l.b16 %v363
        %v1132 = vunpack.c.l.b16 %v364
        %v1133 = vunpack.c.l.b16 %v365
        %v1134 = vunpack.c.l.b16 %v366
        %v1135 = vunpack.c.l.b16 %v367
        %v1136 = vunpack.c.l.b16 %v368
        %v1137 = vunpack.c.l.b16 %v369
        %v1138 = vunpack.c.l.b16 %v370
        %v1139 = vunpack.c.l.b16 %v371
        %v1140 = vunpack.c.l.b16 %v372
        %v1141 = vunpack.c.l.b16 %v373
        %v1142 = vunpack.c.l.b16 %v374
        %v1143 = vunpack.c.l.b16 %v375
        %v1144 = vunpack.c.l.b16 %v376
        %v1145 = vunpack.c.l.b16 %v377
        %v1146 = vunpack.c.l.b16 %v378
        %v1147 = vunpack.c.l.b16 %v379
        %v1148 = vunpack.c.l.b16 %v380
        %v1149 = vunpack.c.l.b16 %v381
        %v1150 = vunpack.c.l.b16 %v382
        %v1151 = vunpack.c.l.b16 %v383
        %v1152 = vunpack.c.l.b16 %v384
        %v1153 = vunpack.c.l.b16 %v385
        %v1154 = vunpack.c.l.b16 %v386
        %v1155 = vunpack.c.l.b16 %v387
        %v1156 = vunpack.c.l.b16 %v388
        %v1157 = vunpack.c.l.b16 %v389
        %v1158 = vunpack.c.l.b16 %v390
        %v1159 = vunpack.c.l.b16 %v391
        %v1160 = vunpack.c.l.b16 %v392
        %v1161 = vunpack.c.l.b16 %v393
        %v1162 = vunpack.c.l.b16 %v394
        %v1163 = vunpack.c.l.b16 %v395
        %v1164 = vunpack.c.l.b16 %v396
        %v1165 = vunpack.c.l.b16 %v397
        %v1166 = vunpack.c.l.b16 %v398
        %v1167 = vunpack.c.l.b16 %v399
        %v1168 = vunpack.c.l.b16 %v400
        %v1169 = vunpack.c.l.b16 %v401
        %v1170 = vunpack.c.l.b16 %v402
        %v1171 = vunpack.c.l.b16 %v403
        %v1172 = vunpack.c.l.b16 %v404
        %v1173 = vunpack.c.l.b16 %v405
        %v1174 = vunpack.c.l.b16 %v406
        %v1175 = vunpack.c.l.b16 %v407
        %v1176 = vunpack.c.l.b16 %v408
        %v1177 = vunpack.c.l.b16 %v409
        %v1178 = vunpack.c.l.b16 %v410
        %v1179 = vunpack.c.l.b16 %v411
        %v1180 = vunpack.c.l.b16 %v412
        %v1181 = vunpack.c.l.b16 %v413
        %v1182 = vunpack.c.l.b16 %v414
        %v1183 = vunpack.c.l.b16 %v415
        %v1184 = vunpack.c.l.b16 %v416
        %v1185 = vunpack.c.l.b16 %v417
        %v1186 = vunpack.c.l.b16 %v418
        %v1187 = vunpack.c.l.b16 %v419
        %v1188 = vunpack.c.l.b16 %v420
        %v1189 = vunpack.c.l.b16 %v421
        %v1190 = vunpack.c.l.b16 %v422
        %v1191 = vunpack.c.l.b16 %v423
        %v1192 = vunpack.c.l.b16 %v424
        %v1193 = vunpack.c.l.b16 %v425
        %v1194 = vunpack.c.l.b16 %v426
        %v1195 = vunpack.c.l.b16 %v427
        %v1196 = vunpack.c.l.b16 %v428
        %v1197 = vunpack.c.l.b16 %v429
        %v1198 = vunpack.c.l.b16 %v430
        %v1199 = vunpack.c.l.b16 %v431
        %v1200 = vunpack.c.l.b16 %v432
        %v1201 = vunpack.c.l.b16 %v433
        %v1202 = vunpack.c.l.b16 %v434
        %v1203 = vunpack.c.l.b16 %v435
        %v1204 = vunpack.c.l.b16 %v436
        %v1205 = vunpack.c.l.b16 %v437
        %v1206 = vunpack.c.l.b16 %v438
        %v1207 = vunpack.c.l.b16 %v439
        %v1208 = vunpack.c.l.b16 %v440
        %v1209 = vunpack.c.l.b16 %v441
        %v1210 = vunpack.c.l.b16 %v442
        %v1211 = vunpack.c.l.b16 %v443
        %v1212 = vunpack.c.l.b16 %v444
        %v1213 = vunpack.c.l.b16 %v445
        %v1214 = vunpack.c.l.b16 %v446
        %v1215 = vunpack.c.l.b16 %v447
        %v1216 = vunpack.c.l.b16 %v448
        %v1217 = vunpack.c.l.b16 %v449
        %v1218 = vunpack.c.l.b16 %v450
        %v1219 = vunpack.c.l.b16 %v451
        %v1220 = vunpack.c.l.b16 %v452
        %v1221 = vunpack.c.l.b16 %v453
        %v1222 = vunpack.c.l.b16 %v454
        %v1223 = vunpack.c.l.b16 %v455
        %v1224 = vunpack.c.l.b16 %v456
        %v1225 = vunpack.c.l.b16 %v457
        %v1226 = vunpack.c.l.b16 %v458
        %v1227 = vunpack.c.l.b16 %v459
        %v1228 = vunpack.c.l.b16 %v460
        %v1229 = vunpack.c.l.b16 %v461
        %v1230 = vunpack.c.l.b16 %v462
        %v1231 = vunpack.c.l.b16 %v463
        %v1232 = vunpack.c.l.b16 %v464
        %v1233 = vunpack.c.l.b16 %v465
        %v1234 = vunpack.c.l.b16 %v466
        %v1235 = vunpack.c.l.b16 %v467
        %v1236 = vunpack.c.l.b16 %v468
        %v1237 = vunpack.c.l.b16 %v469
        %v1238 = vunpack.c.l.b16 %v470
        %v1239 = vunpack.c.l.b16 %v471
        %v1240 = vunpack.c.l.b16 %v472
        %v1241 = vunpack.c.l.b16 %v473
        %v1242 = vunpack.c.l.b16 %v474
        %v1243 = vunpack.c.l.b16 %v475
        %v1244 = vunpack.c.l.b16 %v476
        %v1245 = vunpack.c.l.b16 %v477
        %v1246 = vunpack.c.l.b16 %v478
        %v1247 = vunpack.c.l.b16 %v479
        %v1248 = vunpack.c.l.b16 %v480
        %v1249 = vunpack.c.l.b16 %v481
        %v1250 = vunpack.c.l.b16 %v482
        %v1251 = vunpack.c.l.b16 %v483
        %v1252 = vunpack.c.l.b16 %v484
        %v1253 = vunpack.c.l.b16 %v485
        %v1254 = vunpack.c.l.b16 %v486
        %v1255 = vunpack.c.l.b16 %v487
        %v1256 = vunpack.c.l.b16 %v488
        %v1257 = vunpack.c.l.b16 %v489
        %v1258 = vunpack.c.l.b16 %v490
        %v1259 = vunpack.c.l.b16 %v491
        %v1260 = vunpack.c.l.b16 %v492
        %v1261 = vunpack.c.l.b16 %v493
        %v1262 = vunpack.c.l.b16 %v494
        %v1263 = vunpack.c.l.b16 %v495
        %v1264 = vunpack.c.l.b16 %v496
        %v1265 = vunpack.c.l.b16 %v497
        %v1266 = vunpack.c.l.b16 %v498
        %v1267 = vunpack.c.l.b16 %v499
        %v1268 = vunpack.c.l.b16 %v500
        %v1269 = vunpack.c.l.b16 %v501
        %v1270 = vunpack.c.l.b16 %v502
        %v1271 = vunpack.c.l.b16 %v503
        %v1272 = vunpack.c.l.b16 %v504
        %v1273 = vunpack.c.l.b16 %v505
        %v1274 = vunpack.c.l.b16 %v506
        %v1275 = vunpack.c.l.b16 %v507
        %v1276 = vunpack.c.l.b16 %v508
        %v1277 = vunpack.c.l.b16 %v509
        %v1278 = vunpack.c.l.b16 %v510
        %v1279 = vunpack.c.l.b16 %v511
        %v1280 = vunpack.c.l.b16 %v512
        %v1281 = vunpack.c.l.b16 %v513
        %v1282 = vunpack.c.l.b16 %v514
        %v1283 = vunpack.c.l.b16 %v515
        %v1284 = vunpack.c.l.b16 %v516
        %v1285 = vunpack.c.l.b16 %v517
        %v1286 = vunpack.c.l.b16 %v518
        %v1287 = vunpack.c.l.b16 %v519
        %v1288 = vunpack.c.l.b16 %v520
        %v1289 = vunpack.c.l.b16 %v521
        %v1290 = vunpack.c.l.b16 %v522
        %v1291 = vunpack.c.l.b16 %v523
        %v1292 = vunpack.c.l.b16 %v524
        %v1293 = vunpack.c.l.b16 %v525
        %v1294 = vunpack.c.l.b16 %v526
        %v1295 = vunpack.c.l.b16 %v527
        %v1296 = vunpack.c.l.b16 %v528
        %v1297 = vunpack.c.l.b16 %v529
        %v1298 = vunpack.c.l.b16 %v530
        %v1299 = vunpack.c.l.b16 %v531
        %v1300 = vunpack.c.l.b16 %v532
        %v1301 = vunpack.c.l.b16 %v533
        %v1302 = vunpack.c.l.b16 %v534
        %v1303 = vunpack.c.l.b16 %v535
        %v1304 = vunpack.c.l.b16 %v536
        %v1305 = vunpack.c.l.b16 %v537
        %v1306 = vunpack.c.l.b16 %v538
        %v1307 = vunpack.c.l.b16 %v539
        %v1308 = vunpack.c.l.b16 %v540
        %v1309 = vunpack.c.l.b16 %v541
        %v1310 = vunpack.c.l.b16 %v542
        %v1311 = vunpack.c.l.b16 %v543
        %v1312 = vunpack.c.l.b16 %v544
        %v1313 = vunpack.c.l.b16 %v545
        %v1314 = vunpack.c.l.b16 %v546
        %v1315 = vunpack.c.l.b16 %v547
        %v1316 = vunpack.c.l.b16 %v548
        %v1317 = vunpack.c.l.b16 %v549
        %v1318 = vunpack.c.l.b16 %v550
        %v1319 = vunpack.c.l.b16 %v551
        %v1320 = vunpack.c.l.b16 %v552
        %v1321 = vunpack.c.l.b16 %v553
        %v1322 = vunpack.c.l.b16 %v554
        %v1323 = vunpack.c.l.b16 %v555
        %v1324 = vunpack.c.l.b16 %v556
        %v1325 = vunpack.c.l.b16 %v557
        %v1326 = vunpack.c.l.b16 %v558
        %v1327 = vunpack.c.l.b16 %v559
        %v1328 = vunpack.c.l.b16 %v560
        %v1329 = vunpack.c.l.b16 %v561
        %v1330 = vunpack.c.l.b16 %v562
        %v1331 = vunpack.c.l.b16 %v563
        %v1332 = vunpack.c.l.b16 %v564
        %v1333 = vunpack.c.l.b16 %v565
        %v1334 = vunpack.c.l.b16 %v566
        %v1335 = vunpack.c.l.b16 %v567
        %v1336 = vunpack.c.l.b16 %v568
        %v1337 = vunpack.c.l.b16 %v569
        %v1338 = vunpack.c.l.b16 %v570
        %v1339 = vunpack.c.l.b16 %v571
        %v1340 = vunpack.c.l.b16 %v572
        %v1341 = vunpack.c.l.b16 %v573
        %v1342 = vunpack.c.l.b16 %v574
        %v1343 = vunpack.c.l.b16 %v575
        %v1344 = vunpack.c.l.b16 %v576
        %v1345 = vunpack.c.l.b16 %v577
        %v1346 = vunpack.c.l.b16 %v578
        %v1347 = vunpack.c.l.b16 %v579
        %v1348 = vunpack.c.l.b16 %v580
        %v1349 = vunpack.c.l.b16 %v581
        %v1350 = vunpack.c.l.b16 %v582
        %v1351 = vunpack.c.l.b16 %v583
        %v1352 = vunpack.c.l.b16 %v584
        %v1353 = vunpack.c.l.b16 %v585
        %v1354 = vunpack.c.l.b16 %v586
        %v1355 = vunpack.c.l.b16 %v587
        %v1356 = vunpack.c.l.b16 %v588
        %v1357 = vunpack.c.l.b16 %v589
        %v1358 = vunpack.c.l.b16 %v590
        %v1359 = vunpack.c.l.b16 %v591
        %v1360 = vunpack.c.l.b16 %v592
        %v1361 = vunpack.c.l.b16 %v593
        %v1362 = vunpack.c.l.b16 %v594
        %v1363 = vunpack.c.l.b16 %v595
        %v1364 = vunpack.c.l.b16 %v596
        %v1365 = vunpack.c.l.b16 %v597
        %v1366 = vunpack.c.l.b16 %v598
        %v1367 = vunpack.c.l.b16 %v599
        %v1368 = vunpack.c.l.b16 %v600
        %v1369 = vunpack.c.l.b16 %v601
        %v1370 = vunpack.c.l.b16 %v602
        %v1371 = vunpack.c.l.b16 %v603
        %v1372 = vunpack.c.l.b16 %v604
        %v1373 = vunpack.c.l.b16 %v605
        %v1374 = vunpack.c.l.b16 %v606
        %v1375 = vunpack.c.l.b16 %v607
        %v1376 = vunpack.c.l.b16 %v608
        %v1377 = vunpack.c.l.b16 %v609
        %v1378 = vunpack.c.l.b16 %v610
        %v1379 = vunpack.c.l.b16 %v611
        %v1380 = vunpack.c.l.b16 %v612
        %v1381 = vunpack.c.l.b16 %v613
        %v1382 = vunpack.c.l.b16 %v614
        %v1383 = vunpack.c.l.b16 %v615
        %v1384 = vunpack.c.l.b16 %v616
        %v1385 = vunpack.c.l.b16 %v617
        %v1386 = vunpack.c.l.b16 %v618
        %v1387 = vunpack.c.l.b16 %v619
        %v1388 = vunpack.c.l.b16 %v620
        %v1389 = vunpack.c.l.b16 %v621
        %v1390 = vunpack.c.l.b16 %v622
        %v1391 = vunpack.c.l.b16 %v623
        %v1392 = vunpack.c.l.b16 %v624
        %v1393 = vunpack.c.l.b16 %v625
        %v1394 = vunpack.c.l.b16 %v626
        %v1395 = vunpack.c.l.b16 %v627
        %v1396 = vunpack.c.l.b16 %v628
        %v1397 = vunpack.c.l.b16 %v629
        %v1398 = vunpack.c.l.b16 %v630
        %v1399 = vunpack.c.l.b16 %v631
        %v1400 = vunpack.c.l.b16 %v632
        %v1401 = vunpack.c.l.b16 %v633
        %v1402 = vunpack.c.l.b16 %v634
        %v1403 = vunpack.c.l.b16 %v635
        %v1404 = vunpack.c.l.b16 %v636
        %v1405 = vunpack.c.l.b16 %v637
        %v1406 = vunpack.c.l.b16 %v638
        %v1407 = vunpack.c.l.b16 %v639
        %v1408 = vunpack.c.l.b16 %v640
        %v1409 = vunpack.c.l.b16 %v641
        %v1410 = vunpack.c.l.b16 %v642
        %v1411 = vunpack.c.l.b16 %v643
        %v1412 = vunpack.c.l.b16 %v644
        %v1413 = vunpack.c.l.b16 %v645
        %v1414 = vunpack.c.l.b16 %v646
        %v1415 = vunpack.c.l.b16 %v647
        %v1416 = vunpack.c.l.b16 %v648
        %v1417 = vunpack.c.l.b16 %v649
        %v1418 = vunpack.c.l.b16 %v650
        %v1419 = vunpack.c.l.b16 %v651
        %v1420 = vunpack.c.l.b16 %v652
        %v1421 = vunpack.c.l.b16 %v653
        %v1422 = vunpack.c.l.b16 %v654
        %v1423 = vunpack.c.l.b16 %v655
        %v1424 = vunpack.c.l.b16 %v656
        %v1425 = vunpack.c.l.b16 %v657
        %v1426 = vunpack.c.l.b16 %v658
        %v1427 = vunpack.c.l.b16 %v659
        %v1428 = vunpack.c.l.b16 %v660
        %v1429 = vunpack.c.l.b16 %v661
        %v1430 = vunpack.c.l.b16 %v662
        %v1431 = vunpack.c.l.b16 %v663
        %v1432 = vunpack.c.l.b16 %v664
        %v1433 = vunpack.c.l.b16 %v665
        %v1434 = vunpack.c.l.b16 %v666
        %v1435 = vunpack.c.l.b16 %v667
        %v1436 = vunpack.c.l.b16 %v668
        %v1437 = vunpack.c.l.b16 %v669
        %v1438 = vunpack.c.l.b16 %v670
        %v1439 = vunpack.c.l.b16 %v671
        %v1440 = vunpack.c.l.b16 %v672
        %v1441 = vunpack.c.l.b16 %v673
        %v1442 = vunpack.c.l.b16 %v674
        %v1443 = vunpack.c.l.b16 %v675
        %v1444 = vunpack.c.l.b16 %v676
        %v1445 = vunpack.c.l.b16 %v677
        %v1446 = vunpack.c.l.b16 %v678
        %v1447 = vunpack.c.l.b16 %v679
        %v1448 = vunpack.c.l.b16 %v680
        %v1449 = vunpack.c.l.b16 %v681
        %v1450 = vunpack.c.l.b16 %v682
        %v1451 = vunpack.c.l.b16 %v683
        %v1452 = vunpack.c.l.b16 %v684
        %v1453 = vunpack.c.l.b16 %v685
        %v1454 = vunpack.c.l.b16 %v686
        %v1455 = vunpack.c.l.b16 %v687
        %v1456 = vunpack.c.l.b16 %v688
        %v1457 = vunpack.c.l.b16 %v689
        %v1458 = vunpack.c.l.b16 %v690
        %v1459 = vpack.c.b16 %v1076, %v1075
        %v1460 = vpack.c.b16 %v1078, %v1077
        %v1461 = vpack.c.b16 %v1080, %v1079
        %v1462 = vpack.c.b16 %v1082, %v1081
        %v1463 = vpack.c.b16 %v1084, %v1083
        %v1464 = vpack.c.b16 %v1086, %v1085
        %v1465 = vpack.c.b16 %v1088, %v1087
        %v1466 = vpack.c.b16 %v1090, %v1089
        %v1467 = vpack.c.b16 %v1092, %v1091
        %v1468 = vpack.c.b16 %v1094, %v1093
        %v1469 = vpack.c.b16 %v1096, %v1095
        %v1470 = vpack.c.b16 %v1098, %v1097
        %v1471 = vpack.c.b16 %v1100, %v1099
        %v1472 = vpack.c.b16 %v1102, %v1101
        %v1473 = vpack.c.b16 %v1104, %v1103
        %v1474 = vpack.c.b16 %v1106, %v1105
        %v1475 = vpack.c.b16 %v1108, %v1107
        %v1476 = vpack.c.b16 %v1110, %v1109
        %v1477 = vpack.c.b16 %v1112, %v1111
        %v1478 = vpack.c.b16 %v1114, %v1113
        %v1479 = vpack.c.b16 %v1116, %v1115
        %v1480 = vpack.c.b16 %v1118, %v1117
        %v1481 = vpack.c.b16 %v1120, %v1119
        %v1482 = vpack.c.b16 %v1122, %v1121
        %v1483 = vpack.c.b16 %v1124, %v1123
        %v1484 = vpack.c.b16 %v1126, %v1125
        %v1485 = vpack.c.b16 %v1128, %v1127
        %v1486 = vpack.c.b16 %v1130, %v1129
        %v1487 = vpack.c.b16 %v1132, %v1131
        %v1488 = vpack.c.b16 %v1134, %v1133
        %v1489 = vpack.c.b16 %v1136, %v1135
        %v1490 = vpack.c.b16 %v1138, %v1137
        %v1491 = vpack.c.b16 %v1140, %v1139
        %v1492 = vpack.c.b16 %v1142, %v1141
        %v1493 = vpack.c.b16 %v1144, %v1143
        %v1494 = vpack.c.b16 %v1146, %v1145
        %v1495 = vpack.c.b16 %v1148, %v1147
        %v1496 = vpack.c.b16 %v1150, %v1149
        %v1497 = vpack.c.b16 %v1152, %v1151
        %v1498 = vpack.c.b16 %v1154, %v1153
        %v1499 = vpack.c.b16 %v1156, %v1155
        %v1500 = vpack.c.b16 %v1158, %v1157
        %v1501 = vpack.c.b16 %v1160, %v1159
        %v1502 = vpack.c.b16 %v1162, %v1161
        %v1503 = vpack.c.b16 %v1164, %v1163
        %v1504 = vpack.c.b16 %v1166, %v1165
        %v1505 = vpack.c.b16 %v1168, %v1167
        %v1506 = vpack.c.b16 %v1170, %v1169
        %v1507 = vpack.c.b16 %v1172, %v1171
        %v1508 = vpack.c.b16 %v1174, %v1173
        %v1509 = vpack.c.b16 %v1176, %v1175
        %v1510 = vpack.c.b16 %v1178, %v1177
        %v1511 = vpack.c.b16 %v1180, %v1179
        %v1512 = vpack.c.b16 %v1182, %v1181
        %v1513 = vpack.c.b16 %v1184, %v1183
        %v1514 = vpack.c.b16 %v1186, %v1185
        %v1515 = vpack.c.b16 %v1188, %v1187
        %v1516 = vpack.c.b16 %v1190, %v1189
        %v1517 = vpack.c.b16 %v1192, %v1191
        %v1518 = vpack.c.b16 %v1194, %v1193
        %v1519 = vpack.c.b16 %v1196, %v1195
        %v1520 = vpack.c.b16 %v1198, %v1197
        %v1521 = vpack.c.b16 %v1200, %v1199
        %v1522 = vpack.c.b16 %v1202, %v1201
        %v1523 = vpack.c.b16 %v1204, %v1203
        %v1524 = vpack.c.b16 %v1206, %v1205
        %v1525 = vpack.c.b16 %v1208, %v1207
        %v1526 = vpack.c.b16 %v1210, %v1209
        %v1527 = vpack.c.b16 %v1212, %v1211
        %v1528 = vpack.c.b16 %v1214, %v1213
        %v1529 = vpack.c.b16 %v1216, %v1215
        %v1530 = vpack.c.b16 %v1218, %v1217
        %v1531 = vpack.c.b16 %v1220, %v1219
        %v1532 = vpack.c.b16 %v1222, %v1221
        %v1533 = vpack.c.b16 %v1224, %v1223
        %v1534 = vpack.c.b16 %v1226, %v1225
        %v1535 = vpack.c.b16 %v1228, %v1227
        %v1536 = vpack.c.b16 %v1230, %v1229
        %v1537 = vpack.c.b16 %v1232, %v1231
        %v1538 = vpack.c.b16 %v1234, %v1233
        %v1539 = vpack.c.b16 %v1236, %v1235
        %v1540 = vpack.c.b16 %v1238, %v1237
        %v1541 = vpack.c.b16 %v1240, %v1239
        %v1542 = vpack.c.b16 %v1242, %v1241
        %v1543 = vpack.c.b16 %v1244, %v1243
        %v1544 = vpack.c.b16 %v1246, %v1245
        %v1545 = vpack.c.b16 %v1248, %v1247
        %v1546 = vpack.c.b16 %v1250, %v1249
        %v1547 = vpack.c.b16 %v1252, %v1251
        %v1548 = vpack.c.b16 %v1254, %v1253
        %v1549 = vpack.c.b16 %v1256, %v1255
        %v1550 = vpack.c.b16 %v1258, %v1257
        %v1551 = vpack.c.b16 %v1260, %v1259
        %v1552 = vpack.c.b16 %v1262, %v1261
        %v1553 = vpack.c.b16 %v1264, %v1263
        %v1554 = vpack.c.b16 %v1266, %v1265
        %v1555 = vpack.c.b16 %v1268, %v1267
        %v1556 = vpack.c.b16 %v1270, %v1269
        %v1557 = vpack.c.b16 %v1272, %v1271
        %v1558 = vpack.c.b16 %v1274, %v1273
        %v1559 = vpack.c.b16 %v1276, %v1275
        %v1560 = vpack.c.b16 %v1278, %v1277
        %v1561 = vpack.c.b16 %v1280, %v1279
        %v1562 = vpack.c.b16 %v1282, %v1281
        %v1563 = vpack.c.b16 %v1284, %v1283
        %v1564 = vpack.c.b16 %v1286, %v1285
        %v1565 = vpack.c.b16 %v1288, %v1287
        %v1566 = vpack.c.b16 %v1290, %v1289
        %v1567 = vpack.c.b16 %v1292, %v1291
        %v1568 = vpack.c.b16 %v1294, %v1293
        %v1569 = vpack.c.b16 %v1296, %v1295
        %v1570 = vpack.c.b16 %v1298, %v1297
        %v1571 = vpack.c.b16 %v1300, %v1299
        %v1572 = vpack.c.b16 %v1302, %v1301
        %v1573 = vpack.c.b16 %v1304, %v1303
        %v1574 = vpack.c.b16 %v1306, %v1305
        %v1575 = vpack.c.b16 %v1308, %v1307
        %v1576 = vpack.c.b16 %v1310, %v1309
        %v1577 = vpack.c.b16 %v1312, %v1311
        %v1578 = vpack.c.b16 %v1314, %v1313
        %v1579 = vpack.c.b16 %v1316, %v1315
        %v1580 = vpack.c.b16 %v1318, %v1317
        %v1581 = vpack.c.b16 %v1320, %v1319
        %v1582 = vpack.c.b16 %v1322, %v1321
        %v1583 = vpack.c.b16 %v1324, %v1323
        %v1584 = vpack.c.b16 %v1326, %v1325
        %v1585 = vpack.c.b16 %v1328, %v1327
        %v1586 = vpack.c.b16 %v1330, %v1329
        %v1587 = vpack.c.b16 %v1332, %v1331
        %v1588 = vpack.c.b16 %v1334, %v1333
        %v1589 = vpack.c.b16 %v1336, %v1335
        %v1590 = vpack.c.b16 %v1338, %v1337
        %v1591 = vpack.c.b16 %v1340, %v1339
        %v1592 = vpack.c.b16 %v1342, %v1341
        %v1593 = vpack.c.b16 %v1344, %v1343
        %v1594 = vpack.c.b16 %v1346, %v1345
        %v1595 = vpack.c.b16 %v1348, %v1347
        %v1596 = vpack.c.b16 %v1350, %v1349
        %v1597 = vpack.c.b16 %v1352, %v1351
        %v1598 = vpack.c.b16 %v1354, %v1353
        %v1599 = vpack.c.b16 %v1356, %v1355
        %v1600 = vpack.c.b16 %v1358, %v1357
        %v1601 = vpack.c.b16 %v1360, %v1359
        %v1602 = vpack.c.b16 %v1362, %v1361
        %v1603 = vpack.c.b16 %v1364, %v1363
        %v1604 = vpack.c.b16 %v1366, %v1365
        %v1605 = vpack.c.b16 %v1368, %v1367
        %v1606 = vpack.c.b16 %v1370, %v1369
        %v1607 = vpack.c.b16 %v1372, %v1371
        %v1608 = vpack.c.b16 %v1374, %v1373
        %v1609 = vpack.c.b16 %v1376, %v1375
        %v1610 = vpack.c.b16 %v1378, %v1377
        %v1611 = vpack.c.b16 %v1380, %v1379
        %v1612 = vpack.c.b16 %v1382, %v1381
        %v1613 = vpack.c.b16 %v1384, %v1383
        %v1614 = vpack.c.b16 %v1386, %v1385
        %v1615 = vpack.c.b16 %v1388, %v1387
        %v1616 = vpack.c.b16 %v1390, %v1389
        %v1617 = vpack.c.b16 %v1392, %v1391
        %v1618 = vpack.c.b16 %v1394, %v1393
        %v1619 = vpack.c.b16 %v1396, %v1395
        %v1620 = vpack.c.b16 %v1398, %v1397
        %v1621 = vpack.c.b16 %v1400, %v1399
        %v1622 = vpack.c.b16 %v1402, %v1401
        %v1623 = vpack.c.b16 %v1404, %v1403
        %v1624 = vpack.c.b16 %v1406, %v1405
        %v1625 = vpack.c.b16 %v1408, %v1407
        %v1626 = vpack.c.b16 %v1410, %v1409
        %v1627 = vpack.c.b16 %v1412, %v1411
        %v1628 = vpack.c.b16 %v1414, %v1413
        %v1629 = vpack.c.b16 %v1416, %v1415
        %v1630 = vpack.c.b16 %v1418, %v1417
        %v1631 = vpack.c.b16 %v1420, %v1419
        %v1632 = vpack.c.b16 %v1422, %v1421
        %v1633 = vpack.c.b16 %v1424, %v1423
        %v1634 = vpack.c.b16 %v1426, %v1425
        %v1635 = vpack.c.b16 %v1428, %v1427
        %v1636 = vpack.c.b16 %v1430, %v1429
        %v1637 = vpack.c.b16 %v1432, %v1431
        %v1638 = vpack.c.b16 %v1434, %v1433
        %v1639 = vpack.c.b16 %v1436, %v1435
        %v1640 = vpack.c.b16 %v1438, %v1437
        %v1641 = vpack.c.b16 %v1440, %v1439
        %v1642 = vpack.c.b16 %v1442, %v1441
        %v1643 = vpack.c.b16 %v1444, %v1443
        %v1644 = vpack.c.b16 %v1446, %v1445
        %v1645 = vpack.c.b16 %v1448, %v1447
        %v1646 = vpack.c.b16 %v1450, %v1449
        %v1647 = vpack.c.b16 %v1452, %v1451
        %v1648 = vpack.c.b16 %v1454, %v1453
        %v1649 = vpack.c.b16 %v1456, %v1455
        %v1650 = vpack.c.b16 %v1458, %v1457
        %1843 = vmatprep.subr.bf16.mxu0 0
        %1844 = vmatpush1.bf16.msra.mxu0 %v1459
        %1845 = vmatprep.subr.bf16.mxu0 0
        %1846 = vmatpush1.bf16.msra.mxu0 %v1460
        %1847 = vmatprep.subr.bf16.mxu0 0
        %1848 = vmatpush1.bf16.msra.mxu0 %v1461
        %1849 = vmatprep.subr.bf16.mxu0 0
        %1850 = vmatpush1.bf16.msra.mxu0 %v1462
        %1851 = vmatprep.subr.bf16.mxu0 0
        %1852 = vmatpush1.bf16.msra.mxu0 %v1463
        %1853 = vmatprep.subr.bf16.mxu0 0
        %1854 = vmatpush1.bf16.msra.mxu0 %v1464
        %1855 = vmatprep.subr.bf16.mxu0 0
        %1856 = vmatpush1.bf16.msra.mxu0 %v1465
        %1857 = vmatprep.subr.bf16.mxu0 0
        %1858 = vmatpush1.bf16.msra.mxu0 %v1466
        %1859 = vmatprep.subr.bf16.mxu0 0
        %1860 = vmatpush1.bf16.msra.mxu0 %v1467
        %1861 = vmatprep.subr.bf16.mxu0 0
        %1862 = vmatpush1.bf16.msra.mxu0 %v1468
        %1863 = vmatprep.subr.bf16.mxu0 0
        %1864 = vmatpush1.bf16.msra.mxu0 %v1469
        %1865 = vmatprep.subr.bf16.mxu0 0
        %1866 = vmatpush1.bf16.msra.mxu0 %v1470
        %1867 = vmatprep.subr.bf16.mxu0 0
        %1868 = vmatpush1.bf16.msra.mxu0 %v1471
        %1869 = vmatprep.subr.bf16.mxu0 0
        %1870 = vmatpush1.bf16.msra.mxu0 %v1472
        %1871 = vmatprep.subr.bf16.mxu0 0
        %1872 = vmatpush1.bf16.msra.mxu0 %v1473
        %1873 = vmatprep.subr.bf16.mxu0 0
        %1874 = vmatpush1.bf16.msra.mxu0 %v1474
        %1875 = vmatprep.mubr.bf16.mxu0 %v284
        %1876 = vmatmul.mubr.bf16.gmra.mrb[0].mxu0 %v283
        %v1877 = vpop.f32.mrb[0].mxu0
        %v1878 = vadd.f32 0.0, %v1877
        %v1879 = vpop.f32.mrb[0].mxu0
        %v1880 = vpop.f32.mrb[0].mxu0
        %v1881 = vpop.f32.mrb[0].mxu0
        %1882 = vdwg.mxu0
        %1883 = vmatprep.subr.bf16.mxu0 0
        %1884 = vmatpush1.bf16.msra.mxu0 %v1475
        %1885 = vmatprep.subr.bf16.mxu0 0
        %1886 = vmatpush1.bf16.msra.mxu0 %v1476
        %1887 = vmatprep.subr.bf16.mxu0 0
        %1888 = vmatpush1.bf16.msra.mxu0 %v1477
        %1889 = vmatprep.subr.bf16.mxu0 0
        %1890 = vmatpush1.bf16.msra.mxu0 %v1478
        %1891 = vmatprep.subr.bf16.mxu0 0
        %1892 = vmatpush1.bf16.msra.mxu0 %v1479
        %1893 = vmatprep.subr.bf16.mxu0 0
        %1894 = vmatpush1.bf16.msra.mxu0 %v1480
        %1895 = vmatprep.subr.bf16.mxu0 0
        %1896 = vmatpush1.bf16.msra.mxu0 %v1481
        %1897 = vmatprep.subr.bf16.mxu0 0
        %1898 = vmatpush1.bf16.msra.mxu0 %v1482
        %1899 = vmatprep.subr.bf16.mxu0 0
        %1900 = vmatpush1.bf16.msra.mxu0 %v1483
        %1901 = vmatprep.subr.bf16.mxu0 0
        %1902 = vmatpush1.bf16.msra.mxu0 %v1484
        %1903 = vmatprep.subr.bf16.mxu0 0
        %1904 = vmatpush1.bf16.msra.mxu0 %v1485
        %1905 = vmatprep.subr.bf16.mxu0 0
        %1906 = vmatpush1.bf16.msra.mxu0 %v1486
        %1907 = vmatprep.subr.bf16.mxu0 0
        %1908 = vmatpush1.bf16.msra.mxu0 %v1487
        %1909 = vmatprep.subr.bf16.mxu0 0
        %1910 = vmatpush1.bf16.msra.mxu0 %v1488
        %1911 = vmatprep.subr.bf16.mxu0 0
        %1912 = vmatpush1.bf16.msra.mxu0 %v1489
        %1913 = vmatprep.subr.bf16.mxu0 0
        %1914 = vmatpush1.bf16.msra.mxu0 %v1490
        %1915 = vmatprep.mubr.bf16.mxu0 %v286
        %1916 = vmatmul.mubr.bf16.gmra.mrb[0].mxu0 %v285
        %v1917 = vpop.f32.mrb[0].mxu0
        %v1918 = vadd.f32 %v1878, %v1917
        %v1919 = vpop.f32.mrb[0].mxu0
        %v1920 = vpop.f32.mrb[0].mxu0
        %v1921 = vpop.f32.mrb[0].mxu0
        %1922 = vdwg.mxu0
        %1923 = vmatprep.subr.bf16.mxu0 0
        %1924 = vmatpush1.bf16.msra.mxu0 %v1491
        %1925 = vmatprep.subr.bf16.mxu0 0
        %1926 = vmatpush1.bf16.msra.mxu0 %v1492
        %1927 = vmatprep.subr.bf16.mxu0 0
        %1928 = vmatpush1.bf16.msra.mxu0 %v1493
        %1929 = vmatprep.subr.bf16.mxu0 0
        %1930 = vmatpush1.bf16.msra.mxu0 %v1494
        %1931 = vmatprep.subr.bf16.mxu0 0
        %1932 = vmatpush1.bf16.msra.mxu0 %v1495
        %1933 = vmatprep.subr.bf16.mxu0 0
        %1934 = vmatpush1.bf16.msra.mxu0 %v1496
        %1935 = vmatprep.subr.bf16.mxu0 0
        %1936 = vmatpush1.bf16.msra.mxu0 %v1497
        %1937 = vmatprep.subr.bf16.mxu0 0
        %1938 = vmatpush1.bf16.msra.mxu0 %v1498
        %1939 = vmatprep.subr.bf16.mxu0 0
        %1940 = vmatpush1.bf16.msra.mxu0 %v1499
        %1941 = vmatprep.subr.bf16.mxu0 0
        %1942 = vmatpush1.bf16.msra.mxu0 %v1500
        %1943 = vmatprep.subr.bf16.mxu0 0
        %1944 = vmatpush1.bf16.msra.mxu0 %v1501
        %1945 = vmatprep.subr.bf16.mxu0 0
        %1946 = vmatpush1.bf16.msra.mxu0 %v1502
        %1947 = vmatprep.subr.bf16.mxu0 0
        %1948 = vmatpush1.bf16.msra.mxu0 %v1503
        %1949 = vmatprep.subr.bf16.mxu0 0
        %1950 = vmatpush1.bf16.msra.mxu0 %v1504
        %1951 = vmatprep.subr.bf16.mxu0 0
        %1952 = vmatpush1.bf16.msra.mxu0 %v1505
        %1953 = vmatprep.subr.bf16.mxu0 0
        %1954 = vmatpush1.bf16.msra.mxu0 %v1506
        %1955 = vmatprep.mubr.bf16.mxu0 %v288
        %1956 = vmatmul.mubr.bf16.gmra.mrb[0].mxu0 %v287
        %v1957 = vpop.f32.mrb[0].mxu0
        %v1958 = vadd.f32 %v1918, %v1957
        %v1959 = vpop.f32.mrb[0].mxu0
        %v1960 = vpop.f32.mrb[0].mxu0
        %v1961 = vpop.f32.mrb[0].mxu0
        %1962 = vdwg.mxu0
        %1963 = vmatprep.subr.bf16.mxu0 0
        %1964 = vmatpush1.bf16.msra.mxu0 %v1507
        %1965 = vmatprep.subr.bf16.mxu0 0
        %1966 = vmatpush1.bf16.msra.mxu0 %v1508
        %1967 = vmatprep.subr.bf16.mxu0 0
        %1968 = vmatpush1.bf16.msra.mxu0 %v1509
        %1969 = vmatprep.subr.bf16.mxu0 0
        %1970 = vmatpush1.bf16.msra.mxu0 %v1510
        %1971 = vmatprep.subr.bf16.mxu0 0
        %1972 = vmatpush1.bf16.msra.mxu0 %v1511
        %1973 = vmatprep.subr.bf16.mxu0 0
        %1974 = vmatpush1.bf16.msra.mxu0 %v1512
        %1975 = vmatprep.subr.bf16.mxu0 0
        %1976 = vmatpush1.bf16.msra.mxu0 %v1513
        %1977 = vmatprep.subr.bf16.mxu0 0
        %1978 = vmatpush1.bf16.msra.mxu0 %v1514
        %1979 = vmatprep.subr.bf16.mxu0 0
        %1980 = vmatpush1.bf16.msra.mxu0 %v1515
        %1981 = vmatprep.subr.bf16.mxu0 0
        %1982 = vmatpush1.bf16.msra.mxu0 %v1516
        %1983 = vmatprep.subr.bf16.mxu0 0
        %1984 = vmatpush1.bf16.msra.mxu0 %v1517
        %1985 = vmatprep.subr.bf16.mxu0 0
        %1986 = vmatpush1.bf16.msra.mxu0 %v1518
        %1987 = vmatprep.subr.bf16.mxu0 0
        %1988 = vmatpush1.bf16.msra.mxu0 %v1519
        %1989 = vmatprep.subr.bf16.mxu0 0
        %1990 = vmatpush1.bf16.msra.mxu0 %v1520
        %1991 = vmatprep.subr.bf16.mxu0 0
        %1992 = vmatpush1.bf16.msra.mxu0 %v1521
        %1993 = vmatprep.subr.bf16.mxu0 0
        %1994 = vmatpush1.bf16.msra.mxu0 %v1522
        %1995 = vmatprep.mubr.bf16.mxu0 %v290
        %1996 = vmatmul.mubr.bf16.gmra.mrb[0].mxu0 %v289
        %v1997 = vpop.f32.mrb[0].mxu0
        %v1998 = vadd.f32 %v1958, %v1997
        %v1999 = vpop.f32.mrb[0].mxu0
        %v2000 = vpop.f32.mrb[0].mxu0
        %v2001 = vpop.f32.mrb[0].mxu0
        %2002 = vdwg.mxu0
        %2003 = vmatprep.subr.bf16.mxu0 0
        %2004 = vmatpush1.bf16.msra.mxu0 %v1523
        %2005 = vmatprep.subr.bf16.mxu0 0
        %2006 = vmatpush1.bf16.msra.mxu0 %v1524
        %2007 = vmatprep.subr.bf16.mxu0 0
        %2008 = vmatpush1.bf16.msra.mxu0 %v1525
        %2009 = vmatprep.subr.bf16.mxu0 0
        %2010 = vmatpush1.bf16.msra.mxu0 %v1526
        %2011 = vmatprep.subr.bf16.mxu0 0
        %2012 = vmatpush1.bf16.msra.mxu0 %v1527
        %2013 = vmatprep.subr.bf16.mxu0 0
        %2014 = vmatpush1.bf16.msra.mxu0 %v1528
        %2015 = vmatprep.subr.bf16.mxu0 0
        %2016 = vmatpush1.bf16.msra.mxu0 %v1529
        %2017 = vmatprep.subr.bf16.mxu0 0
        %2018 = vmatpush1.bf16.msra.mxu0 %v1530
        %2019 = vmatprep.subr.bf16.mxu0 0
        %2020 = vmatpush1.bf16.msra.mxu0 %v1531
        %2021 = vmatprep.subr.bf16.mxu0 0
        %2022 = vmatpush1.bf16.msra.mxu0 %v1532
        %2023 = vmatprep.subr.bf16.mxu0 0
        %2024 = vmatpush1.bf16.msra.mxu0 %v1533
        %2025 = vmatprep.subr.bf16.mxu0 0
        %2026 = vmatpush1.bf16.msra.mxu0 %v1534
        %2027 = vmatprep.subr.bf16.mxu0 0
        %2028 = vmatpush1.bf16.msra.mxu0 %v1535
        %2029 = vmatprep.subr.bf16.mxu0 0
        %2030 = vmatpush1.bf16.msra.mxu0 %v1536
        %2031 = vmatprep.subr.bf16.mxu0 0
        %2032 = vmatpush1.bf16.msra.mxu0 %v1537
        %2033 = vmatprep.subr.bf16.mxu0 0
        %2034 = vmatpush1.bf16.msra.mxu0 %v1538
        %2035 = vmatprep.mubr.bf16.mxu0 %v292
        %2036 = vmatmul.mubr.bf16.gmra.mrb[0].mxu0 %v291
        %v2037 = vpop.f32.mrb[0].mxu0
        %v2038 = vadd.f32 %v1998, %v2037
        %v2039 = vpop.f32.mrb[0].mxu0
        %v2040 = vpop.f32.mrb[0].mxu0
        %v2041 = vpop.f32.mrb[0].mxu0
        %2042 = vdwg.mxu0
        %2043 = vmatprep.subr.bf16.mxu0 0
        %2044 = vmatpush1.bf16.msra.mxu0 %v1539
        %2045 = vmatprep.subr.bf16.mxu0 0
        %2046 = vmatpush1.bf16.msra.mxu0 %v1540
        %2047 = vmatprep.subr.bf16.mxu0 0
        %2048 = vmatpush1.bf16.msra.mxu0 %v1541
        %2049 = vmatprep.subr.bf16.mxu0 0
        %2050 = vmatpush1.bf16.msra.mxu0 %v1542
        %2051 = vmatprep.subr.bf16.mxu0 0
        %2052 = vmatpush1.bf16.msra.mxu0 %v1543
        %2053 = vmatprep.subr.bf16.mxu0 0
        %2054 = vmatpush1.bf16.msra.mxu0 %v1544
        %2055 = vmatprep.subr.bf16.mxu0 0
        %2056 = vmatpush1.bf16.msra.mxu0 %v1545
        %2057 = vmatprep.subr.bf16.mxu0 0
        %2058 = vmatpush1.bf16.msra.mxu0 %v1546
        %2059 = vmatprep.subr.bf16.mxu0 0
        %2060 = vmatpush1.bf16.msra.mxu0 %v1547
        %2061 = vmatprep.subr.bf16.mxu0 0
        %2062 = vmatpush1.bf16.msra.mxu0 %v1548
        %2063 = vmatprep.subr.bf16.mxu0 0
        %2064 = vmatpush1.bf16.msra.mxu0 %v1549
        %2065 = vmatprep.subr.bf16.mxu0 0
        %2066 = vmatpush1.bf16.msra.mxu0 %v1550
        %2067 = vmatprep.subr.bf16.mxu0 0
        %2068 = vmatpush1.bf16.msra.mxu0 %v1551
        %2069 = vmatprep.subr.bf16.mxu0 0
        %2070 = vmatpush1.bf16.msra.mxu0 %v1552
        %2071 = vmatprep.subr.bf16.mxu0 0
        %2072 = vmatpush1.bf16.msra.mxu0 %v1553
        %2073 = vmatprep.subr.bf16.mxu0 0
        %2074 = vmatpush1.bf16.msra.mxu0 %v1554
        %2075 = vmatprep.mubr.bf16.mxu0 %v294
        %2076 = vmatmul.mubr.bf16.gmra.mrb[0].mxu0 %v293
        %v2077 = vpop.f32.mrb[0].mxu0
        %v2078 = vadd.f32 %v2038, %v2077
        %v2079 = vpop.f32.mrb[0].mxu0
        %v2080 = vpop.f32.mrb[0].mxu0
        %v2081 = vpop.f32.mrb[0].mxu0
        %2082 = vdwg.mxu0
        %2083 = vmatprep.subr.bf16.mxu0 0
        %2084 = vmatpush1.bf16.msra.mxu0 %v1555
        %2085 = vmatprep.subr.bf16.mxu0 0
        %2086 = vmatpush1.bf16.msra.mxu0 %v1556
        %2087 = vmatprep.subr.bf16.mxu0 0
        %2088 = vmatpush1.bf16.msra.mxu0 %v1557
        %2089 = vmatprep.subr.bf16.mxu0 0
        %2090 = vmatpush1.bf16.msra.mxu0 %v1558
        %2091 = vmatprep.subr.bf16.mxu0 0
        %2092 = vmatpush1.bf16.msra.mxu0 %v1559
        %2093 = vmatprep.subr.bf16.mxu0 0
        %2094 = vmatpush1.bf16.msra.mxu0 %v1560
        %2095 = vmatprep.subr.bf16.mxu0 0
        %2096 = vmatpush1.bf16.msra.mxu0 %v1561
        %2097 = vmatprep.subr.bf16.mxu0 0
        %2098 = vmatpush1.bf16.msra.mxu0 %v1562
        %2099 = vmatprep.subr.bf16.mxu0 0
        %2100 = vmatpush1.bf16.msra.mxu0 %v1563
        %2101 = vmatprep.subr.bf16.mxu0 0
        %2102 = vmatpush1.bf16.msra.mxu0 %v1564
        %2103 = vmatprep.subr.bf16.mxu0 0
        %2104 = vmatpush1.bf16.msra.mxu0 %v1565
        %2105 = vmatprep.subr.bf16.mxu0 0
        %2106 = vmatpush1.bf16.msra.mxu0 %v1566
        %2107 = vmatprep.subr.bf16.mxu0 0
        %2108 = vmatpush1.bf16.msra.mxu0 %v1567
        %2109 = vmatprep.subr.bf16.mxu0 0
        %2110 = vmatpush1.bf16.msra.mxu0 %v1568
        %2111 = vmatprep.subr.bf16.mxu0 0
        %2112 = vmatpush1.bf16.msra.mxu0 %v1569
        %2113 = vmatprep.subr.bf16.mxu0 0
        %2114 = vmatpush1.bf16.msra.mxu0 %v1570
        %2115 = vmatprep.mubr.bf16.mxu0 %v296
        %2116 = vmatmul.mubr.bf16.gmra.mrb[0].mxu0 %v295
        %v2117 = vpop.f32.mrb[0].mxu0
        %v2118 = vadd.f32 %v2078, %v2117
        %v2119 = vpop.f32.mrb[0].mxu0
        %v2120 = vpop.f32.mrb[0].mxu0
        %v2121 = vpop.f32.mrb[0].mxu0
        %2122 = vdwg.mxu0
        %2123 = vmatprep.subr.bf16.mxu0 0
        %2124 = vmatpush1.bf16.msra.mxu0 %v1571
        %2125 = vmatprep.subr.bf16.mxu0 0
        %2126 = vmatpush1.bf16.msra.mxu0 %v1572
        %2127 = vmatprep.subr.bf16.mxu0 0
        %2128 = vmatpush1.bf16.msra.mxu0 %v1573
        %2129 = vmatprep.subr.bf16.mxu0 0
        %2130 = vmatpush1.bf16.msra.mxu0 %v1574
        %2131 = vmatprep.subr.bf16.mxu0 0
        %2132 = vmatpush1.bf16.msra.mxu0 %v1575
        %2133 = vmatprep.subr.bf16.mxu0 0
        %2134 = vmatpush1.bf16.msra.mxu0 %v1576
        %2135 = vmatprep.subr.bf16.mxu0 0
        %2136 = vmatpush1.bf16.msra.mxu0 %v1577
        %2137 = vmatprep.subr.bf16.mxu0 0
        %2138 = vmatpush1.bf16.msra.mxu0 %v1578
        %2139 = vmatprep.subr.bf16.mxu0 0
        %2140 = vmatpush1.bf16.msra.mxu0 %v1579
        %2141 = vmatprep.subr.bf16.mxu0 0
        %2142 = vmatpush1.bf16.msra.mxu0 %v1580
        %2143 = vmatprep.subr.bf16.mxu0 0
        %2144 = vmatpush1.bf16.msra.mxu0 %v1581
        %2145 = vmatprep.subr.bf16.mxu0 0
        %2146 = vmatpush1.bf16.msra.mxu0 %v1582
        %2147 = vmatprep.subr.bf16.mxu0 0
        %2148 = vmatpush1.bf16.msra.mxu0 %v1583
        %2149 = vmatprep.subr.bf16.mxu0 0
        %2150 = vmatpush1.bf16.msra.mxu0 %v1584
        %2151 = vmatprep.subr.bf16.mxu0 0
        %2152 = vmatpush1.bf16.msra.mxu0 %v1585
        %2153 = vmatprep.subr.bf16.mxu0 0
        %2154 = vmatpush1.bf16.msra.mxu0 %v1586
        %2155 = vmatprep.mubr.bf16.mxu0 %v298
        %2156 = vmatmul.mubr.bf16.gmra.mrb[0].mxu0 %v297
        %v2157 = vpop.f32.mrb[0].mxu0
        %v2158 = vadd.f32 %v2118, %v2157
        %v2159 = vpop.f32.mrb[0].mxu0
        %v2160 = vpop.f32.mrb[0].mxu0
        %v2161 = vpop.f32.mrb[0].mxu0
        %2162 = vdwg.mxu0
        %2163 = vmatprep.subr.bf16.mxu0 0
        %2164 = vmatpush1.bf16.msra.mxu0 %v1587
        %2165 = vmatprep.subr.bf16.mxu0 0
        %2166 = vmatpush1.bf16.msra.mxu0 %v1588
        %2167 = vmatprep.subr.bf16.mxu0 0
        %2168 = vmatpush1.bf16.msra.mxu0 %v1589
        %2169 = vmatprep.subr.bf16.mxu0 0
        %2170 = vmatpush1.bf16.msra.mxu0 %v1590
        %2171 = vmatprep.subr.bf16.mxu0 0
        %2172 = vmatpush1.bf16.msra.mxu0 %v1591
        %2173 = vmatprep.subr.bf16.mxu0 0
        %2174 = vmatpush1.bf16.msra.mxu0 %v1592
        %2175 = vmatprep.subr.bf16.mxu0 0
        %2176 = vmatpush1.bf16.msra.mxu0 %v1593
        %2177 = vmatprep.subr.bf16.mxu0 0
        %2178 = vmatpush1.bf16.msra.mxu0 %v1594
        %2179 = vmatprep.subr.bf16.mxu0 0
        %2180 = vmatpush1.bf16.msra.mxu0 %v1595
        %2181 = vmatprep.subr.bf16.mxu0 0
        %2182 = vmatpush1.bf16.msra.mxu0 %v1596
        %2183 = vmatprep.subr.bf16.mxu0 0
        %2184 = vmatpush1.bf16.msra.mxu0 %v1597
        %2185 = vmatprep.subr.bf16.mxu0 0
        %2186 = vmatpush1.bf16.msra.mxu0 %v1598
        %2187 = vmatprep.subr.bf16.mxu0 0
        %2188 = vmatpush1.bf16.msra.mxu0 %v1599
        %2189 = vmatprep.subr.bf16.mxu0 0
        %2190 = vmatpush1.bf16.msra.mxu0 %v1600
        %2191 = vmatprep.subr.bf16.mxu0 0
        %2192 = vmatpush1.bf16.msra.mxu0 %v1601
        %2193 = vmatprep.subr.bf16.mxu0 0
        %2194 = vmatpush1.bf16.msra.mxu0 %v1602
        %2195 = vmatprep.mubr.bf16.mxu0 %v300
        %2196 = vmatmul.mubr.bf16.gmra.mrb[0].mxu0 %v299
        %v2197 = vpop.f32.mrb[0].mxu0
        %v2198 = vadd.f32 %v2158, %v2197
        %v2199 = vpop.f32.mrb[0].mxu0
        %v2200 = vpop.f32.mrb[0].mxu0
        %v2201 = vpop.f32.mrb[0].mxu0
        %2202 = vdwg.mxu0
        %2203 = vmatprep.subr.bf16.mxu0 0
        %2204 = vmatpush1.bf16.msra.mxu0 %v1603
        %2205 = vmatprep.subr.bf16.mxu0 0
        %2206 = vmatpush1.bf16.msra.mxu0 %v1604
        %2207 = vmatprep.subr.bf16.mxu0 0
        %2208 = vmatpush1.bf16.msra.mxu0 %v1605
        %2209 = vmatprep.subr.bf16.mxu0 0
        %2210 = vmatpush1.bf16.msra.mxu0 %v1606
        %2211 = vmatprep.subr.bf16.mxu0 0
        %2212 = vmatpush1.bf16.msra.mxu0 %v1607
        %2213 = vmatprep.subr.bf16.mxu0 0
        %2214 = vmatpush1.bf16.msra.mxu0 %v1608
        %2215 = vmatprep.subr.bf16.mxu0 0
        %2216 = vmatpush1.bf16.msra.mxu0 %v1609
        %2217 = vmatprep.subr.bf16.mxu0 0
        %2218 = vmatpush1.bf16.msra.mxu0 %v1610
        %2219 = vmatprep.subr.bf16.mxu0 0
        %2220 = vmatpush1.bf16.msra.mxu0 %v1611
        %2221 = vmatprep.subr.bf16.mxu0 0
        %2222 = vmatpush1.bf16.msra.mxu0 %v1612
        %2223 = vmatprep.subr.bf16.mxu0 0
        %2224 = vmatpush1.bf16.msra.mxu0 %v1613
        %2225 = vmatprep.subr.bf16.mxu0 0
        %2226 = vmatpush1.bf16.msra.mxu0 %v1614
        %2227 = vmatprep.subr.bf16.mxu0 0
        %2228 = vmatpush1.bf16.msra.mxu0 %v1615
        %2229 = vmatprep.subr.bf16.mxu0 0
        %2230 = vmatpush1.bf16.msra.mxu0 %v1616
        %2231 = vmatprep.subr.bf16.mxu0 0
        %2232 = vmatpush1.bf16.msra.mxu0 %v1617
        %2233 = vmatprep.subr.bf16.mxu0 0
        %2234 = vmatpush1.bf16.msra.mxu0 %v1618
        %2235 = vmatprep.mubr.bf16.mxu0 %v302
        %2236 = vmatmul.mubr.bf16.gmra.mrb[0].mxu0 %v301
        %v2237 = vpop.f32.mrb[0].mxu0
        %v2238 = vadd.f32 %v2198, %v2237
        %v2239 = vpop.f32.mrb[0].mxu0
        %v2240 = vpop.f32.mrb[0].mxu0
        %v2241 = vpop.f32.mrb[0].mxu0
        %2242 = vdwg.mxu0
        %2243 = vmatprep.subr.bf16.mxu0 0
        %2244 = vmatpush1.bf16.msra.mxu0 %v1619
        %2245 = vmatprep.subr.bf16.mxu0 0
        %2246 = vmatpush1.bf16.msra.mxu0 %v1620
        %2247 = vmatprep.subr.bf16.mxu0 0
        %2248 = vmatpush1.bf16.msra.mxu0 %v1621
        %2249 = vmatprep.subr.bf16.mxu0 0
        %2250 = vmatpush1.bf16.msra.mxu0 %v1622
        %2251 = vmatprep.subr.bf16.mxu0 0
        %2252 = vmatpush1.bf16.msra.mxu0 %v1623
        %2253 = vmatprep.subr.bf16.mxu0 0
        %2254 = vmatpush1.bf16.msra.mxu0 %v1624
        %2255 = vmatprep.subr.bf16.mxu0 0
        %2256 = vmatpush1.bf16.msra.mxu0 %v1625
        %2257 = vmatprep.subr.bf16.mxu0 0
        %2258 = vmatpush1.bf16.msra.mxu0 %v1626
        %2259 = vmatprep.subr.bf16.mxu0 0
        %2260 = vmatpush1.bf16.msra.mxu0 %v1627
        %2261 = vmatprep.subr.bf16.mxu0 0
        %2262 = vmatpush1.bf16.msra.mxu0 %v1628
        %2263 = vmatprep.subr.bf16.mxu0 0
        %2264 = vmatpush1.bf16.msra.mxu0 %v1629
        %2265 = vmatprep.subr.bf16.mxu0 0
        %2266 = vmatpush1.bf16.msra.mxu0 %v1630
        %2267 = vmatprep.subr.bf16.mxu0 0
        %2268 = vmatpush1.bf16.msra.mxu0 %v1631
        %2269 = vmatprep.subr.bf16.mxu0 0
        %2270 = vmatpush1.bf16.msra.mxu0 %v1632
        %2271 = vmatprep.subr.bf16.mxu0 0
        %2272 = vmatpush1.bf16.msra.mxu0 %v1633
        %2273 = vmatprep.subr.bf16.mxu0 0
        %2274 = vmatpush1.bf16.msra.mxu0 %v1634
        %2275 = vmatprep.mubr.bf16.mxu0 %v304
        %2276 = vmatmul.mubr.bf16.gmra.mrb[0].mxu0 %v303
        %v2277 = vpop.f32.mrb[0].mxu0
        %v2278 = vadd.f32 %v2238, %v2277
        %v2279 = vpop.f32.mrb[0].mxu0
        %v2280 = vpop.f32.mrb[0].mxu0
        %v2281 = vpop.f32.mrb[0].mxu0
        %2282 = vdwg.mxu0
        %2283 = vmatprep.subr.bf16.mxu0 0
        %2284 = vmatpush1.bf16.msra.mxu0 %v1635
        %2285 = vmatprep.subr.bf16.mxu0 0
        %2286 = vmatpush1.bf16.msra.mxu0 %v1636
        %2287 = vmatprep.subr.bf16.mxu0 0
        %2288 = vmatpush1.bf16.msra.mxu0 %v1637
        %2289 = vmatprep.subr.bf16.mxu0 0
        %2290 = vmatpush1.bf16.msra.mxu0 %v1638
        %2291 = vmatprep.subr.bf16.mxu0 0
        %2292 = vmatpush1.bf16.msra.mxu0 %v1639
        %2293 = vmatprep.subr.bf16.mxu0 0
        %2294 = vmatpush1.bf16.msra.mxu0 %v1640
        %2295 = vmatprep.subr.bf16.mxu0 0
        %2296 = vmatpush1.bf16.msra.mxu0 %v1641
        %2297 = vmatprep.subr.bf16.mxu0 0
        %2298 = vmatpush1.bf16.msra.mxu0 %v1642
        %2299 = vmatprep.subr.bf16.mxu0 0
        %2300 = vmatpush1.bf16.msra.mxu0 %v1643
        %2301 = vmatprep.subr.bf16.mxu0 0
        %2302 = vmatpush1.bf16.msra.mxu0 %v1644
        %2303 = vmatprep.subr.bf16.mxu0 0
        %2304 = vmatpush1.bf16.msra.mxu0 %v1645
        %2305 = vmatprep.subr.bf16.mxu0 0
        %2306 = vmatpush1.bf16.msra.mxu0 %v1646
        %2307 = vmatprep.subr.bf16.mxu0 0
        %2308 = vmatpush1.bf16.msra.mxu0 %v1647
        %2309 = vmatprep.subr.bf16.mxu0 0
        %2310 = vmatpush1.bf16.msra.mxu0 %v1648
        %2311 = vmatprep.subr.bf16.mxu0 0
        %2312 = vmatpush1.bf16.msra.mxu0 %v1649
        %2313 = vmatprep.subr.bf16.mxu0 0
        %2314 = vmatpush1.bf16.msra.mxu0 %v1650
        %2315 = vmatprep.mubr.bf16.mxu0 %v306
        %2316 = vmatmul.mubr.bf16.gmra.mrb[0].mxu0 %v305
        %v2317 = vpop.f32.mrb[0].mxu0
        %v2318 = vadd.f32 %v2278, %v2317
        %v2319 = vpop.f32.mrb[0].mxu0
        %v2320 = vpop.f32.mrb[0].mxu0
        %v2321 = vpop.f32.mrb[0].mxu0
        %2322 = vdwg.mxu0
        %v2323 = vmax.f32 %v2318, 0.0
        %v2324 = vpack.c.bf16 %v2323, %v2323
        %v2325 = vld [vmem:[#allocation7] sm:$0xf]
        %v2326 = vld [vmem:[#allocation7 + $0x4] sm:$0xf]
        %v2327 = vld [vmem:[#allocation7 + $0x8] sm:$0xf]
        %v2328 = vld [vmem:[#allocation7 + $0xc] sm:$0xf]
        %v2329 = vld [vmem:[#allocation7 + $0x10] sm:$0xf]
        %v2330 = vld [vmem:[#allocation7 + $0x14] sm:$0xf]
        %v2331 = vld [vmem:[#allocation7 + $0x18] sm:$0xf]
        %v2332 = vld [vmem:[#allocation7 + $0x1c] sm:$0xf]
        %v2333 = vld [vmem:[#allocation7 + $0x20] sm:$0xf]
        %v2334 = vld [vmem:[#allocation7 + $0x24] sm:$0xf]
        %v2335 = vld [vmem:[#allocation7 + $0x28] sm:$0xf]
        %v2336 = vld [vmem:[#allocation7 + $0x2c] sm:$0xf]
        %v2337 = vld [vmem:[#allocation7 + $0x30] sm:$0xf]
        %v2338 = vld [vmem:[#allocation7 + $0x34] sm:$0xf]
        %v2339 = vld [vmem:[#allocation7 + $0x38] sm:$0xf]
        %v2340 = vld [vmem:[#allocation7 + $0x3c] sm:$0xf]
        %v2357 = vunpack.c.l.b16 %v2325
        %v2358 = vunpack.c.l.b16 %v2326
        %v2359 = vunpack.c.l.b16 %v2327
        %v2360 = vunpack.c.l.b16 %v2328
        %v2361 = vunpack.c.l.b16 %v2329
        %v2362 = vunpack.c.l.b16 %v2330
        %v2363 = vunpack.c.l.b16 %v2331
        %v2364 = vunpack.c.l.b16 %v2332
        %v2365 = vunpack.c.l.b16 %v2333
        %v2366 = vunpack.c.l.b16 %v2334
        %v2367 = vunpack.c.l.b16 %v2335
        %v2368 = vunpack.c.l.b16 %v2336
        %v2369 = vunpack.c.l.b16 %v2337
        %v2370 = vunpack.c.l.b16 %v2338
        %v2371 = vunpack.c.l.b16 %v2339
        %v2372 = vunpack.c.l.b16 %v2340
        %v2373 = vpack.c.b16 %v2358, %v2357
        %v2374 = vpack.c.b16 %v2360, %v2359
        %v2375 = vpack.c.b16 %v2362, %v2361
        %v2376 = vpack.c.b16 %v2364, %v2363
        %v2377 = vpack.c.b16 %v2366, %v2365
        %v2378 = vpack.c.b16 %v2368, %v2367
        %v2379 = vpack.c.b16 %v2370, %v2369
        %v2380 = vpack.c.b16 %v2372, %v2371
        %2389 = vmatprep.subr.bf16.mxu0 0
        %2390 = vmatpush1.bf16.msra.mxu0 %v2373
        %2391 = vmatprep.subr.bf16.mxu0 0
        %2392 = vmatpush1.bf16.msra.mxu0 %v2374
        %2393 = vmatprep.subr.bf16.mxu0 0
        %2394 = vmatpush1.bf16.msra.mxu0 %v2375
        %2395 = vmatprep.subr.bf16.mxu0 0
        %2396 = vmatpush1.bf16.msra.mxu0 %v2376
        %2397 = vmatprep.subr.bf16.mxu0 0
        %2398 = vmatpush1.bf16.msra.mxu0 %v2377
        %2399 = vmatprep.subr.bf16.mxu0 0
        %2400 = vmatpush1.bf16.msra.mxu0 %v2378
        %2401 = vmatprep.subr.bf16.mxu0 0
        %2402 = vmatpush1.bf16.msra.mxu0 %v2379
        %2403 = vmatprep.subr.bf16.mxu0 0
        %2404 = vmatpush1.bf16.msra.mxu0 %v2380
        %2405 = vmatprep.subr.bf16.mxu0 0
        %2406 = vmatpush1.bf16.msra.mxu0 0
        %2407 = vmatprep.subr.bf16.mxu0 0
        %2408 = vmatpush1.bf16.msra.mxu0 0
        %2409 = vmatprep.subr.bf16.mxu0 0
        %2410 = vmatpush1.bf16.msra.mxu0 0
        %2411 = vmatprep.subr.bf16.mxu0 0
        %2412 = vmatpush1.bf16.msra.mxu0 0
        %2413 = vmatprep.subr.bf16.mxu0 0
        %2414 = vmatpush1.bf16.msra.mxu0 0
        %2415 = vmatprep.subr.bf16.mxu0 0
        %2416 = vmatpush1.bf16.msra.mxu0 0
        %2417 = vmatprep.subr.bf16.mxu0 0
        %2418 = vmatpush1.bf16.msra.mxu0 0
        %2419 = vmatprep.subr.bf16.mxu0 0
        %2420 = vmatpush1.bf16.msra.mxu0 0
        %2421 = vmatprep.mubr.bf16.mxu0 0
        %2422 = vmatmul.mubr.bf16.gmra.mrb[0].mxu0 %v2324
        %v2423 = vpop.f32.mrb[0].mxu0
        %v2424 = vadd.f32 0.0, %v2423
        %v2425 = vpop.f32.mrb[0].mxu0
        %v2426 = vpop.f32.mrb[0].mxu0
        %v2427 = vpop.f32.mrb[0].mxu0
        %2428 = vdwg.mxu0
        %v2429 = vmax.f32 %v2424, 0.0
        %v2430 = vpack.c.bf16 %v2429, %v2429
        %v2431 = vld [vmem:[#allocation8] sm:$0xf]
        %v2432 = vld [vmem:[#allocation8 + $0x4] sm:$0xf]
        %v2433 = vld [vmem:[#allocation8 + $0x8] sm:$0xf]
        %v2434 = vld [vmem:[#allocation8 + $0xc] sm:$0xf]
        %v2435 = vld [vmem:[#allocation8 + $0x10] sm:$0xf]
        %v2436 = vld [vmem:[#allocation8 + $0x14] sm:$0xf]
        %v2437 = vld [vmem:[#allocation8 + $0x18] sm:$0xf]
        %v2438 = vld [vmem:[#allocation8 + $0x1c] sm:$0xf]
        %v2439 = vld [vmem:[#allocation8 + $0x20] sm:$0xf]
        %v2440 = vld [vmem:[#allocation8 + $0x24] sm:$0xf]
        %v2441 = vld [vmem:[#allocation8 + $0x28] sm:$0xf]
        %v2442 = vld [vmem:[#allocation8 + $0x2c] sm:$0xf]
        %v2443 = vld [vmem:[#allocation8 + $0x30] sm:$0xf]
        %v2444 = vld [vmem:[#allocation8 + $0x34] sm:$0xf]
        %v2445 = vld [vmem:[#allocation8 + $0x38] sm:$0xf]
        %v2446 = vld [vmem:[#allocation8 + $0x3c] sm:$0xf]
        %v2463 = vunpack.c.l.b16 %v2431
        %v2464 = vunpack.c.l.b16 %v2432
        %v2465 = vunpack.c.l.b16 %v2433
        %v2466 = vunpack.c.l.b16 %v2434
        %v2467 = vunpack.c.l.b16 %v2435
        %v2468 = vunpack.c.l.b16 %v2436
        %v2469 = vunpack.c.l.b16 %v2437
        %v2470 = vunpack.c.l.b16 %v2438
        %v2471 = vunpack.c.l.b16 %v2439
        %v2472 = vunpack.c.l.b16 %v2440
        %v2473 = vunpack.c.l.b16 %v2441
        %v2474 = vunpack.c.l.b16 %v2442
        %v2475 = vunpack.c.l.b16 %v2443
        %v2476 = vunpack.c.l.b16 %v2444
        %v2477 = vunpack.c.l.b16 %v2445
        %v2478 = vunpack.c.l.b16 %v2446
        %v2479 = vpack.c.b16 %v2464, %v2463
        %v2480 = vpack.c.b16 %v2466, %v2465
        %v2481 = vpack.c.b16 %v2468, %v2467
        %v2482 = vpack.c.b16 %v2470, %v2469
        %v2483 = vpack.c.b16 %v2472, %v2471
        %v2484 = vpack.c.b16 %v2474, %v2473
        %v2485 = vpack.c.b16 %v2476, %v2475
        %v2486 = vpack.c.b16 %v2478, %v2477
        %2495 = vmatprep.subr.bf16.mxu0 0
        %2496 = vmatpush1.bf16.msra.mxu0 %v2479
        %2497 = vmatprep.subr.bf16.mxu0 0
        %2498 = vmatpush1.bf16.msra.mxu0 %v2480
        %2499 = vmatprep.subr.bf16.mxu0 0
        %2500 = vmatpush1.bf16.msra.mxu0 %v2481
        %2501 = vmatprep.subr.bf16.mxu0 0
        %2502 = vmatpush1.bf16.msra.mxu0 %v2482
        %2503 = vmatprep.subr.bf16.mxu0 0
        %2504 = vmatpush1.bf16.msra.mxu0 %v2483
        %2505 = vmatprep.subr.bf16.mxu0 0
        %2506 = vmatpush1.bf16.msra.mxu0 %v2484
        %2507 = vmatprep.subr.bf16.mxu0 0
        %2508 = vmatpush1.bf16.msra.mxu0 %v2485
        %2509 = vmatprep.subr.bf16.mxu0 0
        %2510 = vmatpush1.bf16.msra.mxu0 %v2486
        %2511 = vmatprep.subr.bf16.mxu0 0
        %2512 = vmatpush1.bf16.msra.mxu0 0
        %2513 = vmatprep.subr.bf16.mxu0 0
        %2514 = vmatpush1.bf16.msra.mxu0 0
        %2515 = vmatprep.subr.bf16.mxu0 0
        %2516 = vmatpush1.bf16.msra.mxu0 0
        %2517 = vmatprep.subr.bf16.mxu0 0
        %2518 = vmatpush1.bf16.msra.mxu0 0
        %2519 = vmatprep.subr.bf16.mxu0 0
        %2520 = vmatpush1.bf16.msra.mxu0 0
        %2521 = vmatprep.subr.bf16.mxu0 0
        %2522 = vmatpush1.bf16.msra.mxu0 0
        %2523 = vmatprep.subr.bf16.mxu0 0
        %2524 = vmatpush1.bf16.msra.mxu0 0
        %2525 = vmatprep.subr.bf16.mxu0 0
        %2526 = vmatpush1.bf16.msra.mxu0 0
        %2527 = vmatprep.mubr.bf16.mxu0 0
        %2528 = vmatmul.mubr.bf16.gmra.mrb[0].mxu0 %v2430
        %v2529 = vpop.f32.mrb[0].mxu0
        %v2530 = vadd.f32 0.0, %v2529
        %v2531 = vpop.f32.mrb[0].mxu0
        %v2532 = vpop.f32.mrb[0].mxu0
        %v2533 = vpop.f32.mrb[0].mxu0
        %2534 = vdwg.mxu0
        %2535 = vst [vmem:[%s257] sm:$0xff] %v2530
        %s2536 = sand.u32 %s120, 1
        %s2537 = scalar_lea.sflag [#allocation4], %s2536
        %s2538 = sand.u32 %s120, 1
        %s2539 = smul.addr %s2538, 8
        %s2540 = scalar_lea.vmem [#allocation10], %s2539
        // Predicated region
        $region53: #{tpu_custom_call.1} parent=35 // pred_check
          %p2541 = pneg %p130
        $region54: #{tpu_custom_call.1} parent=35 // pred_check_branch
          %2543 = sbr.rel (%p2541) target = $region56
        $region55: #{tpu_custom_call.1} parent=35 // pred_region
          %s2545 = ssub.s32 128, 128
          %2546 = vsyncadd %s2537, %s2545
          %s2547 = smul.addr %s23, 128
          %s2548 = scalar_lea.hbm %s4, %s2547
          %s2550 = sshll.u32 %s2540, 4
          %s2551 = int_to_ptr.vmem [resolvable:$true] %s2550
          %2553 = dma.vmem_to_hbm [thread:$0]  %s2551, 128, %s2548, %s2537
        $region56: #{tpu_custom_call.1} parent=35 // pred_fallthru
          _
      $region36: #{tpu_custom_call.1} parent=5 // pred_fallthru
        _
      %p2554 = scmp.le.s32.totalorder 2, %s18
      // Predicated region
      $region57: #{tpu_custom_call.1} parent=5 // pred_check
        %p2555 = pneg %p2554
      $region58: #{tpu_custom_call.1} parent=5 // pred_check_branch
        %2557 = sbr.rel (%p2555) target = $region60
      $region59: #{tpu_custom_call.1} parent=5 // pred_region
        %s2558 = ssub.s32 %s18, 2
        // Predicated region
        $region61: #{tpu_custom_call.1} parent=59 // pred_check
          %p2559 = pneg %p136
        $region62: #{tpu_custom_call.1} parent=59 // pred_check_branch
          %2561 = sbr.rel (%p2559) target = $region64
        $region63: #{tpu_custom_call.1} parent=59 // pred_region
          %s2562 = sand.u32 %s121, 1
          %s2563 = scalar_lea.sflag [#allocation4], %s2562
          %s2564 = sand.u32 %s121, 1
          %s2565 = smul.addr %s2564, 8
          %s2566 = scalar_lea.vmem [#allocation10], %s2565
          %2567 = dma.done %s2563, 128
        $region64: #{tpu_custom_call.1} parent=59 // pred_fallthru
          _
      $region60: #{tpu_custom_call.1} parent=5 // pred_fallthru
        _
    $region6: #{tpu_custom_call.1} parent=1 // loop_footer
      %s22 = sadd.s32 1, %s18
    $region7: #{tpu_custom_call.1} parent=1 // loop_footer_branch
      %17 = sbr.rel target = $region3
    $region8: #{tpu_custom_call.1} parent=1 // loop_exit
      _
    %2568 = vsyncpa [#allocation3], 1
    %s2569 = scalar_lea.sflag [#allocation3], 1
    %2570 = vsyncpa %s2569, 1
    %2571 = vsyncpa [#allocation6], 1
    %2572 = vsyncpa [#allocation9], 1
    %2573 = vsyncpa [#allocation4], 1
    %s2574 = scalar_lea.sflag [#allocation4], 1
    %2575 = vsyncpa %s2574, 1

</llo_original>
